<compile_context>
chip_gen: v6e
topology: v6e:2x2x1
jax: 0.10.0
libtpu: 0.0.40
codegen_flags: <defaults>
</compile_context>

<pallas_src>
import functools

import numpy as np
import jax
import jax.numpy as jnp
from jax.experimental import pallas as pl
from jax.experimental.pallas import tpu as pltpu

MXU_DTYPE = jnp.bfloat16      # MXU input dtype (accumulation is f32)
LANE = 128                    # lane-dense channel padding


# ----------------------------------------------------------------------------
# small helpers
# ----------------------------------------------------------------------------
def _round_up(n, m):
    return ((n + m - 1) // m) * m


def _softplus(x):
    # matches torch.nn.functional.softplus (beta=1, threshold=20)
    return jnp.where(x > 20.0, x, jnp.log(1.0 + jnp.exp(jnp.minimum(x, 20.0))))


def _layernorm_ref(x, gamma, beta, eps=1e-5):
    mu = jnp.mean(x, axis=-1, keepdims=True)
    var = jnp.mean(jnp.square(x - mu), axis=-1, keepdims=True)
    return (x - mu) * jax.lax.rsqrt(var + eps) * gamma + beta


# ----------------------------------------------------------------------------
# fused encoder kernel: grid = (batch_tiles, num_layers)
# ----------------------------------------------------------------------------
def encoder_kernel(x0_ref, gamma_ref, beta_ref, in_w_ref, conv_w_ref,
                   dt_w_ref, dt_b_ref, out_w_ref, ls_ref,
                   fgamma_ref, fbeta_ref, o_ref, *, d_model, mxu_dtype):
    layer = pl.program_id(1)
    n_layers = pl.num_programs(1)

    TB, L, Dp = o_ref.shape
    Cp = dt_w_ref.shape[-1]
    M = TB * L
    needs_mask = (d_model != Dp)          # skip mask math when D is lane-aligned
    inv_d = 1.0 / float(d_model)

    if needs_mask:
        chan = jax.lax.broadcasted_iota(jnp.int32, (1, Dp), 1)
        chan_mask = (chan < d_model).astype(jnp.float32)

    def _mm(a, w):   # activation -> bf16; weights are pre-cast bf16; f32 accumulate
        return jnp.dot(a.astype(mxu_dtype), w, preferred_element_type=jnp.float32)

    def _layernorm(x, gamma, beta, eps=1e-5):
        if needs_mask:
            # statistics over the real d_model channels only (padded cols are 0)
            mu = jnp.sum(x, axis=-1, keepdims=True) * inv_d
            diff = (x - mu) * chan_mask
            var = jnp.sum(diff * diff, axis=-1, keepdims=True) * inv_d
        else:
            mu = jnp.mean(x, axis=-1, keepdims=True)
            diff = x - mu
            var = jnp.mean(diff * diff, axis=-1, keepdims=True)
        return diff * jax.lax.rsqrt(var + eps) * gamma + beta

    # ---- layer 0: seed the VMEM-resident activation -------------------------
    # (folded embedding gather + positional encoding, computed in plain JAX)
    @pl.when(layer == 0)
    def _():
        o_ref[...] = x0_ref[...]

    # ---- one StatefulMambaBlock (non-stateful path, reverse=False) ----------
    x = o_ref[...].reshape(M, Dp)                              # residual stream
    xn = _layernorm(x, gamma_ref[0, 0, :], beta_ref[0, 0, :])

    proj = _mm(xn, in_w_ref[0])                                # (M, 2*Cp)
    x1 = proj[:, :Cp]
    x2 = proj[:, Cp:]

    # depthwise Conv1d over L, kernel_size=3, padding=1:
    # XLU sublane rotates on the flattened rows + boundary masks.  Cross-batch
    # wrap rows are exactly the masked (t==0 / t==L-1) rows.
    row = jax.lax.broadcasted_iota(jnp.int32, (M, 1), 0) % L
    x_prev = jnp.where(row == 0, 0.0, pltpu.roll(x1, 1, axis=0))
    x_next = jnp.where(row == L - 1, 0.0, pltpu.roll(x1, M - 1, axis=0))
    cw = conv_w_ref[0]                                         # (3, Cp)
    x1_conv = x_prev * cw[0, :] + x1 * cw[1, :] + x_next * cw[2, :]

    x1_ssm = x1_conv * jax.nn.sigmoid(x1_conv)                 # SiLU

    dt = _softplus(_mm(x1_ssm, dt_w_ref[0]) + dt_b_ref[0, 0, :])

    # TODO(synk): stateful_mode hidden/conv-state carry across forward calls is
    # not implemented (module default is stateful_mode=False / eval path).
    gated = (x1_ssm * jax.nn.sigmoid(dt)) * jax.nn.sigmoid(x2)

    out = _mm(gated, out_w_ref[0])                             # (M, Dp)
    new_x = out * ls_ref[0, 0, :] + x

    # ---- single store per grid step; final LayerNorm fused into last step ---
    @pl.when(layer < n_layers - 1)
    def _():
        o_ref[...] = new_x.reshape(TB, L, Dp)

    @pl.when(layer == n_layers - 1)
    def _():
        y = _layernorm(new_x, fgamma_ref[0, :], fbeta_ref[0, :])
        o_ref[...] = y.reshape(TB, L, Dp)


# ----------------------------------------------------------------------------
# parameter construction (logical, unpadded) and kernel-side packing (padded)
# ----------------------------------------------------------------------------
def make_params(key, vocab_size, embed_dim, hidden_dim, num_layers,
                expand_factor):
    d_inner = int(hidden_dim * expand_factor)
    keys = iter(jax.random.split(key, 4 + 5 * num_layers))

    params = {
        "embedding": jax.random.normal(next(keys), (vocab_size, embed_dim),
                                       jnp.float32) * 0.1,
        # Linear weights stored pre-transposed: (in, out)
        "embed_w": jax.random.normal(next(keys), (embed_dim, hidden_dim),
                                     jnp.float32) * 0.1,
        "embed_b": jax.random.normal(next(keys), (hidden_dim,),
                                     jnp.float32) * 0.05,
        "pos": jax.random.normal(next(keys), (1, 2048, hidden_dim),
                                 jnp.float32) * 0.02,
        "final_gamma": jnp.ones((hidden_dim,), jnp.float32),
        "final_beta": jnp.zeros((hidden_dim,), jnp.float32),
        "layers": [],
    }
    for _ in range(num_layers):
        params["layers"].append({
            "gamma": jnp.ones((hidden_dim,), jnp.float32),
            "beta": jnp.zeros((hidden_dim,), jnp.float32),
            "in_w": jax.random.normal(next(keys), (hidden_dim, 2 * d_inner),
                                      jnp.float32) * 0.1,
            "conv_w": jax.random.normal(next(keys), (3, d_inner),
                                        jnp.float32) * 0.2,
            "dt_w": jax.random.normal(next(keys), (d_inner, d_inner),
                                      jnp.float32) * 0.1,
            "dt_b": jax.random.normal(next(keys), (d_inner,),
                                      jnp.float32) * 0.05,
            "out_w": jax.random.normal(next(keys), (d_inner, hidden_dim),
                                       jnp.float32) * 0.1,
            "ls": jnp.full((hidden_dim,), 0.1, jnp.float32),
        })
    return params


def _pad_to(x, shape):
    return jnp.pad(x, [(0, t - s) for s, t in zip(x.shape, shape)])


def prepare_kernel_params(params):
    """Zero-pad channel dims to multiples of 128, stack per-layer weights,
    pre-cast streamed matmul weights to bf16, fold the embed projection."""
    D = params["final_gamma"].shape[0]
    C = params["layers"][0]["dt_w"].shape[0]
    Dp, Cp = _round_up(D, LANE), _round_up(C, LANE)
    V = params["embedding"].shape[0]
    P = params["pos"].shape[1]

    # Fold the embedding projection offline: one (V, Dp) f32 gather table.
    embed_table = params["embedding"] @ params["embed_w"] + params["embed_b"]

    def pad_in_w(w):  # (D, 2C) -> (Dp, 2Cp), halves kept lane-aligned
        z = jnp.zeros((Dp, 2 * Cp), jnp.float32)
        z = z.at[:D, :C].set(w[:, :C])
        z = z.at[:D, Cp:Cp + C].set(w[:, C:])
        return z

    lys = params["layers"]
    return {
        "d_model": D, "d_inner": C,
        "embed_table": _pad_to(embed_table, (V, Dp)),
        "pos": _pad_to(params["pos"], (1, P, Dp)),
        "final_gamma": _pad_to(params["final_gamma"][None, :], (1, Dp)),
        "final_beta": _pad_to(params["final_beta"][None, :], (1, Dp)),
        "gamma": jnp.stack([_pad_to(l["gamma"][None, :], (1, Dp)) for l in lys]),
        "beta": jnp.stack([_pad_to(l["beta"][None, :], (1, Dp)) for l in lys]),
        # streamed matmul weights shipped as bf16 (halve HBM traffic + VMEM)
        "in_w": jnp.stack([pad_in_w(l["in_w"]) for l in lys]).astype(MXU_DTYPE),
        "conv_w": jnp.stack([_pad_to(l["conv_w"], (3, Cp)) for l in lys]),
        "dt_w": jnp.stack([_pad_to(l["dt_w"], (Cp, Cp))
                           for l in lys]).astype(MXU_DTYPE),
        "dt_b": jnp.stack([_pad_to(l["dt_b"][None, :], (1, Cp)) for l in lys]),
        "out_w": jnp.stack([_pad_to(l["out_w"], (Cp, Dp))
                            for l in lys]).astype(MXU_DTYPE),
        "ls": jnp.stack([_pad_to(l["ls"][None, :], (1, Dp)) for l in lys]),
    }


def _vmem_limit_bytes():
    """Generation-aware VMEM limit (~48 MiB on v7x, ~96 MiB on v5e/v6e)."""
    cap = 128 * 1024 * 1024
    try:
        cap = int(getattr(pltpu.get_tpu_info(), "vmem_capacity_bytes", cap))
    except Exception:
        pass
    return min(cap * 3 // 4, 100 * 1024 * 1024)


# ----------------------------------------------------------------------------
# wrapper: one fused pallas_call for the whole encoder forward
# ----------------------------------------------------------------------------
def encoder_forward(tokens, params, kparams=None, *, block_b=None,
                    mxu_dtype=MXU_DTYPE):
    """StatefulMambaTextEncoder.forward(tokens, return_sequence=True)."""
    if kparams is None:
        kparams = prepare_kernel_params(params)

    B, L = tokens.shape
    D = kparams["d_model"]
    Dp = kparams["embed_table"].shape[1]
    Cp = kparams["dt_w"].shape[-1]
    NL = kparams["in_w"].shape[0]
    assert L <= kparams["pos"].shape[1]

    if block_b is None:
        # >=2 batch tiles lets the "parallel" axis shard across both v7x
        # TensorCores; on single-TC v5e/v6e pass block_b=B for one big tile.
        block_b = B // 2 if (B >= 2 and B % 2 == 0) else B
    block_b = max(1, min(block_b, B))
    assert B % block_b == 0, "batch must be divisible by block_b"
    TB = block_b

    # plain-JAX glue: folded-embedding gather + positional encoding (exact f32)
    x0 = kparams["embed_table"][tokens] + kparams["pos"][:, :L, :]   # (B, L, Dp)

    batch3 = lambda b, l: (b, 0, 0)
    layer3 = lambda b, l: (l, 0, 0)
    const2 = lambda b, l: (0, 0)

    in_specs = [
        pl.BlockSpec((TB, L, Dp), batch3),        # x0 (layer-invariant -> no re-DMA)
        pl.BlockSpec((1, 1, Dp), layer3),         # gamma   (streamed per layer)
        pl.BlockSpec((1, 1, Dp), layer3),         # beta
        pl.BlockSpec((1, Dp, 2 * Cp), layer3),    # in_w   (bf16 stream)
        pl.BlockSpec((1, 3, Cp), layer3),         # conv_w
        pl.BlockSpec((1, Cp, Cp), layer3),        # dt_w   (bf16 stream)
        pl.BlockSpec((1, 1, Cp), layer3),         # dt_b
        pl.BlockSpec((1, Cp, Dp), layer3),        # out_w  (bf16 stream)
        pl.BlockSpec((1, 1, Dp), layer3),         # ls
        pl.BlockSpec((1, Dp), const2),            # final_gamma
        pl.BlockSpec((1, Dp), const2),            # final_beta
    ]
    out_specs = pl.BlockSpec((TB, L, Dp), batch3)  # VMEM-resident across layers

    operands = (x0, kparams["gamma"], kparams["beta"], kparams["in_w"],
                kparams["conv_w"], kparams["dt_w"], kparams["dt_b"],
                kparams["out_w"], kparams["ls"],
                kparams["final_gamma"], kparams["final_beta"])

    flops = 2 * B * L * NL * (Dp * 2 * Cp + Cp * Cp + Cp * Dp)
    bytes_acc = sum(int(a.size) * a.dtype.itemsize for a in operands) \
        + B * L * Dp * 4
    cost = pl.CostEstimate(flops=int(flops),
                           transcendentals=int(B * L * NL * (5 * Cp + Dp)),
                           bytes_accessed=int(bytes_acc))

    out_padded = pl.pallas_call(
        functools.partial(encoder_kernel, d_model=D, mxu_dtype=mxu_dtype),
        grid=(B // TB, NL),
        in_specs=in_specs,
        out_specs=out_specs,
        out_shape=jax.ShapeDtypeStruct((B, L, Dp), jnp.float32),
        compiler_params=pltpu.CompilerParams(
            dimension_semantics=("parallel", "arbitrary"),
            vmem_limit_bytes=_vmem_limit_bytes(),
        ),
        cost_estimate=cost,
    )(*operands)

    # TODO(synk): for very long sequences on v7x (64 MiB VMEM), chunk L inside
    # the kernel (inner fori_loop with a 1-row conv halo) to bound the live
    # f32 intermediates instead of holding the full (TB, L, Cp) chain.
    return out_padded[:, :, :D]


# ----------------------------------------------------------------------------
# Pure-JAX reference (PyTorch semantics, unpadded, f32) for a sanity check
# ----------------------------------------------------------------------------
def reference_forward(tokens, params):
    L = tokens.shape[1]
    x = params["embedding"][tokens]
    x = x @ params["embed_w"] + params["embed_b"]
    x = x + params["pos"][:, :L, :]
    for lp in params["layers"]:
        residual = x
        xn = _layernorm_ref(x, lp["gamma"], lp["beta"])
        proj = xn @ lp["in_w"]
        C = lp["dt_w"].shape[0]
        x1, x2 = proj[..., :C], proj[..., C:]
        xp = jnp.pad(x1, ((0, 0), (1, 1), (0, 0)))
        conv = (xp[:, :-2] * lp["conv_w"][0]
                + xp[:, 1:-1] * lp["conv_w"][1]
                + xp[:, 2:] * lp["conv_w"][2])
        ssm = conv * jax.nn.sigmoid(conv)
        dt = _softplus(ssm @ lp["dt_w"] + lp["dt_b"])
        gated = (ssm * jax.nn.sigmoid(dt)) * jax.nn.sigmoid(x2)
        x = (gated @ lp["out_w"]) * lp["ls"] + residual
    return _layernorm_ref(x, params["final_gamma"], params["final_beta"])


if __name__ == "__main__":
    # Small config consistent with the module
    vocab_size, embed_dim, hidden_dim = 50, 16, 32
    num_layers, expand_factor = 2, 1.5
    B, L = 2, 8

    key = jax.random.PRNGKey(0)
    pkey, tkey = jax.random.split(key)
    params = make_params(pkey, vocab_size, embed_dim, hidden_dim,
                         num_layers, expand_factor)
    tokens = jax.random.randint(tkey, (B, L), 0, vocab_size, dtype=jnp.int32)

    kparams = prepare_kernel_params(params)
    out = encoder_forward(tokens, params, kparams)
    out = jax.block_until_ready(out)
    assert out.shape == (B, L, hidden_dim)
    assert bool(jnp.all(jnp.isfinite(out)))

    ref = jax.block_until_ready(reference_forward(tokens, params))
    # bf16 MXU weights/inputs (f32 accumulate) vs f32 reference -> relaxed tol
    np.testing.assert_allclose(np.asarray(out), np.asarray(ref),
                               rtol=2e-2, atol=2e-2)

    print("KERNEL_OK")
</pallas_src>

<mosaic_0001>
module attributes {stable_mosaic.version = 11 : i64} {
  func.func @encoder_kernel(%arg0: i32, %arg1: i32, %arg2: memref<1x8x128xf32, #tpu.memory_space<vmem>>, %arg3: memref<1x1x128xf32, #tpu.memory_space<vmem>>, %arg4: memref<1x1x128xf32, #tpu.memory_space<vmem>>, %arg5: memref<1x128x256xbf16, #tpu.memory_space<vmem>>, %arg6: memref<1x3x128xf32, #tpu.memory_space<vmem>>, %arg7: memref<1x128x128xbf16, #tpu.memory_space<vmem>>, %arg8: memref<1x1x128xf32, #tpu.memory_space<vmem>>, %arg9: memref<1x128x128xbf16, #tpu.memory_space<vmem>>, %arg10: memref<1x1x128xf32, #tpu.memory_space<vmem>>, %arg11: memref<1x128xf32, #tpu.memory_space<vmem>>, %arg12: memref<1x128xf32, #tpu.memory_space<vmem>>, %arg13: memref<1x8x128xf32, #tpu.memory_space<vmem>>) attributes {dimension_semantics = [#tpu.dimension_semantics<parallel>, #tpu.dimension_semantics<arbitrary>], iteration_bounds = array<i64: 2, 2>, scalar_prefetch = 0 : i64, scratch_operands = 0 : i64, tpu.core_type = #tpu.core_type<tc>, window_params = [{transform_indices = @transform_0, window_bounds = array<i64: 1, 8, 128>}, {transform_indices = @transform_1, window_bounds = array<i64: 1, 1, 128>}, {transform_indices = @transform_2, window_bounds = array<i64: 1, 1, 128>}, {transform_indices = @transform_3, window_bounds = array<i64: 1, 128, 256>}, {transform_indices = @transform_4, window_bounds = array<i64: 1, 3, 128>}, {transform_indices = @transform_5, window_bounds = array<i64: 1, 128, 128>}, {transform_indices = @transform_6, window_bounds = array<i64: 1, 1, 128>}, {transform_indices = @transform_7, window_bounds = array<i64: 1, 128, 128>}, {transform_indices = @transform_8, window_bounds = array<i64: 1, 1, 128>}, {pipeline_mode = #tpu.pipeline_mode<synchronous>, transform_indices = @transform_9, window_bounds = array<i64: 1, 128>}, {pipeline_mode = #tpu.pipeline_mode<synchronous>, transform_indices = @transform_10, window_bounds = array<i64: 1, 128>}, {transform_indices = @transform_11, window_bounds = array<i64: 1, 8, 128>}]} {
    %0 = tpu.iota {dimensions = array<i32: 1>} : vector<1x128xi32>
    %c32_i32 = arith.constant 32 : i32
    %1 = vector.broadcast %c32_i32 : i32 to vector<1x128xi32>
    %2 = arith.cmpi slt, %0, %1 : vector<1x128xi32>
    %3 = arith.extui %2 : vector<1x128xi1> to vector<1x128xi32>
    %4 = arith.sitofp %3 : vector<1x128xi32> to vector<1x128xf32>
    %c0_i32 = arith.constant 0 : i32
    %5 = arith.cmpi eq, %arg1, %c0_i32 : i32
    %6 = arith.extui %5 : i1 to i32
    %c0_i32_0 = arith.constant 0 : i32
    %7 = arith.cmpi ne, %6, %c0_i32_0 : i32
    scf.if %7 {
      %c0_53 = arith.constant 0 : index
      %c0_54 = arith.constant 0 : index
      %c0_55 = arith.constant 0 : index
      %146 = vector.load %arg2[%c0_53, %c0_54, %c0_55] : memref<1x8x128xf32, #tpu.memory_space<vmem>>, vector<1x8x128xf32>
      %c0_56 = arith.constant 0 : index
      %c0_57 = arith.constant 0 : index
      %c0_58 = arith.constant 0 : index
      %147 = vector.load %arg13[%c0_56, %c0_57, %c0_58] : memref<1x8x128xf32, #tpu.memory_space<vmem>>, vector<1x8x128xf32>
      tpu.vector_store %arg13[%c0_56, %c0_57, %c0_58], %146 {strides = array<i32>} : memref<1x8x128xf32, #tpu.memory_space<vmem>>, vector<1x8x128xf32>,
    } else {
    }
    %c0 = arith.constant 0 : index
    %c0_1 = arith.constant 0 : index
    %c0_2 = arith.constant 0 : index
    %8 = vector.load %arg13[%c0, %c0_1, %c0_2] : memref<1x8x128xf32, #tpu.memory_space<vmem>>, vector<1x8x128xf32>
    %9 = vector.shape_cast %8 : vector<1x8x128xf32> to vector<8x128xf32>
    %c0_3 = arith.constant 0 : index
    %c0_4 = arith.constant 0 : index
    %c0_5 = arith.constant 0 : index
    %10 = vector.load %arg3[%c0_3, %c0_4, %c0_5] : memref<1x1x128xf32, #tpu.memory_space<vmem>>, vector<1x1x128xf32>
    %11 = vector.shape_cast %10 : vector<1x1x128xf32> to vector<128xf32>
    %c0_6 = arith.constant 0 : index
    %c0_7 = arith.constant 0 : index
    %c0_8 = arith.constant 0 : index
    %12 = vector.load %arg4[%c0_6, %c0_7, %c0_8] : memref<1x1x128xf32, #tpu.memory_space<vmem>>, vector<1x1x128xf32>
    %13 = vector.shape_cast %12 : vector<1x1x128xf32> to vector<128xf32>
    %cst = arith.constant dense<0.000000e+00> : vector<8xf32>
    %14 = vector.multi_reduction <add>, %9, %cst [1] : vector<8x128xf32> to vector<8xf32>
    %15 = vector.shape_cast %14 : vector<8xf32> to vector<8x1xf32>
    %cst_9 = arith.constant 3.125000e-02 : f32
    %16 = vector.broadcast %cst_9 : f32 to vector<8x1xf32>
    %17 = arith.mulf %15, %16 : vector<8x1xf32>
    %18 = vector.broadcast %17 : vector<8x1xf32> to vector<8x128xf32>
    %19 = arith.subf %9, %18 : vector<8x128xf32>
    %20 = vector.broadcast %4 : vector<1x128xf32> to vector<8x128xf32>
    %21 = arith.mulf %19, %20 : vector<8x128xf32>
    %22 = arith.mulf %21, %21 : vector<8x128xf32>
    %cst_10 = arith.constant dense<0.000000e+00> : vector<8xf32>
    %23 = vector.multi_reduction <add>, %22, %cst_10 [1] : vector<8x128xf32> to vector<8xf32>
    %24 = vector.shape_cast %23 : vector<8xf32> to vector<8x1xf32>
    %cst_11 = arith.constant 3.125000e-02 : f32
    %25 = vector.broadcast %cst_11 : f32 to vector<8x1xf32>
    %26 = arith.mulf %24, %25 : vector<8x1xf32>
    %cst_12 = arith.constant 9.99999974E-6 : f32
    %27 = vector.broadcast %cst_12 : f32 to vector<8x1xf32>
    %28 = arith.addf %26, %27 : vector<8x1xf32>
    %29 = math.rsqrt %28 : vector<8x1xf32>
    %30 = vector.broadcast %29 : vector<8x1xf32> to vector<8x128xf32>
    %31 = arith.mulf %21, %30 : vector<8x128xf32>
    %32 = vector.shape_cast %11 : vector<128xf32> to vector<1x128xf32>
    %33 = vector.broadcast %32 : vector<1x128xf32> to vector<8x128xf32>
    %34 = arith.mulf %31, %33 : vector<8x128xf32>
    %35 = vector.shape_cast %13 : vector<128xf32> to vector<1x128xf32>
    %36 = vector.broadcast %35 : vector<1x128xf32> to vector<8x128xf32>
    %37 = arith.addf %34, %36 : vector<8x128xf32>
    %c0_13 = arith.constant 0 : index
    %c0_14 = arith.constant 0 : index
    %c0_15 = arith.constant 0 : index
    %38 = vector.load %arg5[%c0_13, %c0_14, %c0_15] : memref<1x128x256xbf16, #tpu.memory_space<vmem>>, vector<1x128x256xbf16>
    %39 = vector.shape_cast %38 : vector<1x128x256xbf16> to vector<128x256xbf16>
    %40 = arith.truncf %37 : vector<8x128xf32> to vector<8x128xbf16>
    %cst_16 = arith.constant dense<0.000000e+00> : vector<8x256xf32>
    %41 = tpu.matmul %40, %39, %cst_16 {dimension_numbers = #tpu.dot_dimension_numbers<[1], [0], [0], [1], [0, 0, 1, 1], [], []>} : vector<8x128xbf16>, vector<128x256xbf16>, vector<8x256xf32> -> vector<8x256xf32>
    %42 = vector.extract_strided_slice %41 {offsets = [0, 0], sizes = [8, 128], strides = [1, 1]} : vector<8x256xf32> to vector<8x128xf32>
    %43 = vector.extract_strided_slice %41 {offsets = [0, 128], sizes = [8, 128], strides = [1, 1]} : vector<8x256xf32> to vector<8x128xf32>
    %44 = tpu.iota {dimensions = array<i32: 0>} : vector<8x1xi32>
    %c8_i32 = arith.constant 8 : i32
    %c0_i32_17 = arith.constant 0 : i32
    %45 = arith.cmpi eq, %c8_i32, %c0_i32_17 : i32
    %c1_i32 = arith.constant 1 : i32
    %46 = arith.select %45, %c1_i32, %c8_i32 : i32
    %47 = vector.broadcast %46 : i32 to vector<8x1xi32>
    %48 = arith.remsi %44, %47 : vector<8x1xi32>
    %c0_i32_18 = arith.constant 0 : i32
    %49 = vector.broadcast %c0_i32_18 : i32 to vector<8x1xi32>
    %50 = arith.cmpi ne, %48, %49 : vector<8x1xi32>
    %c0_i32_19 = arith.constant 0 : i32
    %51 = vector.broadcast %c0_i32_19 : i32 to vector<8x1xi32>
    %52 = arith.cmpi slt, %48, %51 : vector<8x1xi32>
    %c0_i32_20 = arith.constant 0 : i32
    %53 = arith.cmpi slt, %46, %c0_i32_20 : i32
    %54 = vector.broadcast %53 : i1 to vector<8x1xi1>
    %55 = vector.broadcast %54 : vector<8x1xi1> to vector<8x1xi1>
    %56 = arith.xori %52, %55 : vector<8x1xi1>
    %57 = arith.andi %56, %50 : vector<8x1xi1>
    %58 = vector.broadcast %46 : i32 to vector<8x1xi32>
    %59 = arith.addi %48, %58 : vector<8x1xi32>
    %60 = arith.select %57, %59, %48 : vector<8x1xi1>, vector<8x1xi32>
    %c0_i32_21 = arith.constant 0 : i32
    %61 = vector.broadcast %c0_i32_21 : i32 to vector<8x1xi32>
    %62 = arith.cmpi eq, %60, %61 : vector<8x1xi32>
    %c1_i32_22 = arith.constant 1 : i32
    %63 = tpu.dynamic_rotate %42 by %c1_i32_22 dim 0 : vector<8x128xf32>, i32 -> vector<8x128xf32>
    %cst_23 = arith.constant 0.000000e+00 : f32
    %64 = vector.shape_cast %62 : vector<8x1xi1> to vector<8x1xi1>
    %65 = vector.broadcast %64 : vector<8x1xi1> to vector<8x128xi1>
    %66 = vector.broadcast %cst_23 : f32 to vector<8x128xf32>
    %67 = arith.select %65, %66, %63 : vector<8x128xi1>, vector<8x128xf32>
    %c7_i32 = arith.constant 7 : i32
    %68 = vector.broadcast %c7_i32 : i32 to vector<8x1xi32>
    %69 = arith.cmpi eq, %60, %68 : vector<8x1xi32>
    %c7_i32_24 = arith.constant 7 : i32
    %70 = tpu.dynamic_rotate %42 by %c7_i32_24 dim 0 : vector<8x128xf32>, i32 -> vector<8x128xf32>
    %cst_25 = arith.constant 0.000000e+00 : f32
    %71 = vector.shape_cast %69 : vector<8x1xi1> to vector<8x1xi1>
    %72 = vector.broadcast %71 : vector<8x1xi1> to vector<8x128xi1>
    %73 = vector.broadcast %cst_25 : f32 to vector<8x128xf32>
    %74 = arith.select %72, %73, %70 : vector<8x128xi1>, vector<8x128xf32>
    %c0_26 = arith.constant 0 : index
    %c0_27 = arith.constant 0 : index
    %c0_28 = arith.constant 0 : index
    %75 = vector.load %arg6[%c0_26, %c0_27, %c0_28] : memref<1x3x128xf32, #tpu.memory_space<vmem>>, vector<1x3x128xf32>
    %76 = vector.shape_cast %75 : vector<1x3x128xf32> to vector<3x128xf32>
    %77 = vector.extract_strided_slice %76 {offsets = [0, 0], sizes = [1, 128], strides = [1, 1]} : vector<3x128xf32> to vector<1x128xf32>
    %78 = vector.shape_cast %77 : vector<1x128xf32> to vector<128xf32>
    %79 = vector.shape_cast %78 : vector<128xf32> to vector<1x128xf32>
    %80 = vector.broadcast %79 : vector<1x128xf32> to vector<8x128xf32>
    %81 = arith.mulf %67, %80 : vector<8x128xf32>
    %82 = vector.extract_strided_slice %76 {offsets = [1, 0], sizes = [1, 128], strides = [1, 1]} : vector<3x128xf32> to vector<1x128xf32>
    %83 = vector.shape_cast %82 : vector<1x128xf32> to vector<128xf32>
    %84 = vector.shape_cast %83 : vector<128xf32> to vector<1x128xf32>
    %85 = vector.broadcast %84 : vector<1x128xf32> to vector<8x128xf32>
    %86 = arith.mulf %42, %85 : vector<8x128xf32>
    %87 = arith.addf %81, %86 : vector<8x128xf32>
    %88 = vector.extract_strided_slice %76 {offsets = [2, 0], sizes = [1, 128], strides = [1, 1]} : vector<3x128xf32> to vector<1x128xf32>
    %89 = vector.shape_cast %88 : vector<1x128xf32> to vector<128xf32>
    %90 = vector.shape_cast %89 : vector<128xf32> to vector<1x128xf32>
    %91 = vector.broadcast %90 : vector<1x128xf32> to vector<8x128xf32>
    %92 = arith.mulf %74, %91 : vector<8x128xf32>
    %93 = arith.addf %87, %92 : vector<8x128xf32>
    %94 = arith.negf %93 : vector<8x128xf32>
    %95 = math.exp %94 : vector<8x128xf32>
    %cst_29 = arith.constant 1.000000e+00 : f32
    %96 = vector.broadcast %cst_29 : f32 to vector<8x128xf32>
    %97 = arith.addf %96, %95 : vector<8x128xf32>
    %98 = arith.divf %96, %97 : vector<8x128xf32>
    %99 = arith.mulf %93, %98 : vector<8x128xf32>
    %c0_30 = arith.constant 0 : index
    %c0_31 = arith.constant 0 : index
    %c0_32 = arith.constant 0 : index
    %100 = vector.load %arg7[%c0_30, %c0_31, %c0_32] : memref<1x128x128xbf16, #tpu.memory_space<vmem>>, vector<1x128x128xbf16>
    %101 = vector.shape_cast %100 : vector<1x128x128xbf16> to vector<128x128xbf16>
    %102 = arith.truncf %99 : vector<8x128xf32> to vector<8x128xbf16>
    %cst_33 = arith.constant dense<0.000000e+00> : vector<8x128xf32>
    %103 = tpu.matmul %102, %101, %cst_33 {dimension_numbers = #tpu.dot_dimension_numbers<[1], [0], [0], [1], [0, 0, 1, 1], [], []>} : vector<8x128xbf16>, vector<128x128xbf16>, vector<8x128xf32> -> vector<8x128xf32>
    %c0_34 = arith.constant 0 : index
    %c0_35 = arith.constant 0 : index
    %c0_36 = arith.constant 0 : index
    %104 = vector.load %arg8[%c0_34, %c0_35, %c0_36] : memref<1x1x128xf32, #tpu.memory_space<vmem>>, vector<1x1x128xf32>
    %105 = vector.shape_cast %104 : vector<1x1x128xf32> to vector<128xf32>
    %106 = vector.shape_cast %105 : vector<128xf32> to vector<1x128xf32>
    %107 = vector.broadcast %106 : vector<1x128xf32> to vector<8x128xf32>
    %108 = arith.addf %103, %107 : vector<8x128xf32>
    %cst_37 = arith.constant 2.000000e+01 : f32
    %109 = vector.broadcast %cst_37 : f32 to vector<8x128xf32>
    %110 = arith.cmpf ogt, %108, %109 : vector<8x128xf32>
    %cst_38 = arith.constant 2.000000e+01 : f32
    %111 = vector.broadcast %cst_38 : f32 to vector<8x128xf32>
    %112 = arith.minimumf %108, %111 : vector<8x128xf32>
    %113 = math.exp %112 : vector<8x128xf32>
    %cst_39 = arith.constant 1.000000e+00 : f32
    %114 = vector.broadcast %cst_39 : f32 to vector<8x128xf32>
    %115 = arith.addf %114, %113 : vector<8x128xf32>
    %116 = math.log %115 : vector<8x128xf32>
    %117 = arith.select %110, %108, %116 : vector<8x128xi1>, vector<8x128xf32>
    %118 = arith.negf %117 : vector<8x128xf32>
    %119 = math.exp %118 : vector<8x128xf32>
    %cst_40 = arith.constant 1.000000e+00 : f32
    %120 = vector.broadcast %cst_40 : f32 to vector<8x128xf32>
    %121 = arith.addf %120, %119 : vector<8x128xf32>
    %122 = arith.divf %120, %121 : vector<8x128xf32>
    %123 = arith.mulf %99, %122 : vector<8x128xf32>
    %124 = arith.negf %43 : vector<8x128xf32>
    %125 = math.exp %124 : vector<8x128xf32>
    %cst_41 = arith.constant 1.000000e+00 : f32
    %126 = vector.broadcast %cst_41 : f32 to vector<8x128xf32>
    %127 = arith.addf %126, %125 : vector<8x128xf32>
    %128 = arith.divf %126, %127 : vector<8x128xf32>
    %129 = arith.mulf %123, %128 : vector<8x128xf32>
    %c0_42 = arith.constant 0 : index
    %c0_43 = arith.constant 0 : index
    %c0_44 = arith.constant 0 : index
    %130 = vector.load %arg9[%c0_42, %c0_43, %c0_44] : memref<1x128x128xbf16, #tpu.memory_space<vmem>>, vector<1x128x128xbf16>
    %131 = vector.shape_cast %130 : vector<1x128x128xbf16> to vector<128x128xbf16>
    %132 = arith.truncf %129 : vector<8x128xf32> to vector<8x128xbf16>
    %cst_45 = arith.constant dense<0.000000e+00> : vector<8x128xf32>
    %133 = tpu.matmul %132, %131, %cst_45 {dimension_numbers = #tpu.dot_dimension_numbers<[1], [0], [0], [1], [0, 0, 1, 1], [], []>} : vector<8x128xbf16>, vector<128x128xbf16>, vector<8x128xf32> -> vector<8x128xf32>
    %c0_46 = arith.constant 0 : index
    %c0_47 = arith.constant 0 : index
    %c0_48 = arith.constant 0 : index
    %134 = vector.load %arg10[%c0_46, %c0_47, %c0_48] : memref<1x1x128xf32, #tpu.memory_space<vmem>>, vector<1x1x128xf32>
    %135 = vector.shape_cast %134 : vector<1x1x128xf32> to vector<128xf32>
    %136 = vector.shape_cast %135 : vector<128xf32> to vector<1x128xf32>
    %137 = vector.broadcast %136 : vector<1x128xf32> to vector<8x128xf32>
    %138 = arith.mulf %133, %137 : vector<8x128xf32>
    %139 = arith.addf %138, %9 : vector<8x128xf32>
    %c1_i32_49 = arith.constant 1 : i32
    %140 = arith.cmpi slt, %arg1, %c1_i32_49 : i32
    %141 = arith.extui %140 : i1 to i32
    %c0_i32_50 = arith.constant 0 : i32
    %142 = arith.cmpi ne, %141, %c0_i32_50 : i32
    scf.if %142 {
      %146 = vector.shape_cast %139 : vector<8x128xf32> to vector<1x8x128xf32>
      %c0_53 = arith.constant 0 : index
      %c0_54 = arith.constant 0 : index
      %c0_55 = arith.constant 0 : index
      %147 = vector.load %arg13[%c0_53, %c0_54, %c0_55] : memref<1x8x128xf32, #tpu.memory_space<vmem>>, vector<1x8x128xf32>
      tpu.vector_store %arg13[%c0_53, %c0_54, %c0_55], %146 {strides = array<i32>} : memref<1x8x128xf32, #tpu.memory_space<vmem>>, vector<1x8x128xf32>,
    } else {
    }
    %c1_i32_51 = arith.constant 1 : i32
    %143 = arith.cmpi eq, %arg1, %c1_i32_51 : i32
    %144 = arith.extui %143 : i1 to i32
    %c0_i32_52 = arith.constant 0 : i32
    %145 = arith.cmpi ne, %144, %c0_i32_52 : i32
    scf.if %145 {
      %c0_53 = arith.constant 0 : index
      %c0_54 = arith.constant 0 : index
      %146 = vector.load %arg11[%c0_53, %c0_54] : memref<1x128xf32, #tpu.memory_space<vmem>>, vector<1x128xf32>
      %147 = vector.shape_cast %146 : vector<1x128xf32> to vector<128xf32>
      %c0_55 = arith.constant 0 : index
      %c0_56 = arith.constant 0 : index
      %148 = vector.load %arg12[%c0_55, %c0_56] : memref<1x128xf32, #tpu.memory_space<vmem>>, vector<1x128xf32>
      %149 = vector.shape_cast %148 : vector<1x128xf32> to vector<128xf32>
      %cst_57 = arith.constant dense<0.000000e+00> : vector<8xf32>
      %150 = vector.multi_reduction <add>, %139, %cst_57 [1] : vector<8x128xf32> to vector<8xf32>
      %151 = vector.shape_cast %150 : vector<8xf32> to vector<8x1xf32>
      %cst_58 = arith.constant 3.125000e-02 : f32
      %152 = vector.broadcast %cst_58 : f32 to vector<8x1xf32>
      %153 = arith.mulf %151, %152 : vector<8x1xf32>
      %154 = vector.broadcast %153 : vector<8x1xf32> to vector<8x128xf32>
      %155 = arith.subf %139, %154 : vector<8x128xf32>
      %156 = vector.broadcast %4 : vector<1x128xf32> to vector<8x128xf32>
      %157 = arith.mulf %155, %156 : vector<8x128xf32>
      %158 = arith.mulf %157, %157 : vector<8x128xf32>
      %cst_59 = arith.constant dense<0.000000e+00> : vector<8xf32>
      %159 = vector.multi_reduction <add>, %158, %cst_59 [1] : vector<8x128xf32> to vector<8xf32>
      %160 = vector.shape_cast %159 : vector<8xf32> to vector<8x1xf32>
      %cst_60 = arith.constant 3.125000e-02 : f32
      %161 = vector.broadcast %cst_60 : f32 to vector<8x1xf32>
      %162 = arith.mulf %160, %161 : vector<8x1xf32>
      %cst_61 = arith.constant 9.99999974E-6 : f32
      %163 = vector.broadcast %cst_61 : f32 to vector<8x1xf32>
      %164 = arith.addf %162, %163 : vector<8x1xf32>
      %165 = math.rsqrt %164 : vector<8x1xf32>
      %166 = vector.broadcast %165 : vector<8x1xf32> to vector<8x128xf32>
      %167 = arith.mulf %157, %166 : vector<8x128xf32>
      %168 = vector.shape_cast %147 : vector<128xf32> to vector<1x128xf32>
      %169 = vector.broadcast %168 : vector<1x128xf32> to vector<8x128xf32>
      %170 = arith.mulf %167, %169 : vector<8x128xf32>
      %171 = vector.shape_cast %149 : vector<128xf32> to vector<1x128xf32>
      %172 = vector.broadcast %171 : vector<1x128xf32> to vector<8x128xf32>
      %173 = arith.addf %170, %172 : vector<8x128xf32>
      %174 = vector.shape_cast %173 : vector<8x128xf32> to vector<1x8x128xf32>
      %c0_62 = arith.constant 0 : index
      %c0_63 = arith.constant 0 : index
      %c0_64 = arith.constant 0 : index
      %175 = vector.load %arg13[%c0_62, %c0_63, %c0_64] : memref<1x8x128xf32, #tpu.memory_space<vmem>>, vector<1x8x128xf32>
      tpu.vector_store %arg13[%c0_62, %c0_63, %c0_64], %174 {strides = array<i32>} : memref<1x8x128xf32, #tpu.memory_space<vmem>>, vector<1x8x128xf32>,
    } else {
    }
    return
  }
  func.func @transform_0(%arg0: i32, %arg1: i32) -> (i32, i32, i32) {
    %c0_i32 = arith.constant 0 : i32
    %c0_i32_0 = arith.constant 0 : i32
    %c0_i32_1 = arith.constant 0 : i32
    return %arg0, %c0_i32, %c0_i32_0 : i32, i32, i32
  }
  func.func @transform_1(%arg0: i32, %arg1: i32) -> (i32, i32, i32) {
    %c0_i32 = arith.constant 0 : i32
    %c0_i32_0 = arith.constant 0 : i32
    %c0_i32_1 = arith.constant 0 : i32
    return %arg1, %c0_i32, %c0_i32_0 : i32, i32, i32
  }
  func.func @transform_2(%arg0: i32, %arg1: i32) -> (i32, i32, i32) {
    %c0_i32 = arith.constant 0 : i32
    %c0_i32_0 = arith.constant 0 : i32
    %c0_i32_1 = arith.constant 0 : i32
    return %arg1, %c0_i32, %c0_i32_0 : i32, i32, i32
  }
  func.func @transform_3(%arg0: i32, %arg1: i32) -> (i32, i32, i32) {
    %c0_i32 = arith.constant 0 : i32
    %c0_i32_0 = arith.constant 0 : i32
    %c0_i32_1 = arith.constant 0 : i32
    return %arg1, %c0_i32, %c0_i32_0 : i32, i32, i32
  }
  func.func @transform_4(%arg0: i32, %arg1: i32) -> (i32, i32, i32) {
    %c0_i32 = arith.constant 0 : i32
    %c0_i32_0 = arith.constant 0 : i32
    %c0_i32_1 = arith.constant 0 : i32
    return %arg1, %c0_i32, %c0_i32_0 : i32, i32, i32
  }
  func.func @transform_5(%arg0: i32, %arg1: i32) -> (i32, i32, i32) {
    %c0_i32 = arith.constant 0 : i32
    %c0_i32_0 = arith.constant 0 : i32
    %c0_i32_1 = arith.constant 0 : i32
    return %arg1, %c0_i32, %c0_i32_0 : i32, i32, i32
  }
  func.func @transform_6(%arg0: i32, %arg1: i32) -> (i32, i32, i32) {
    %c0_i32 = arith.constant 0 : i32
    %c0_i32_0 = arith.constant 0 : i32
    %c0_i32_1 = arith.constant 0 : i32
    return %arg1, %c0_i32, %c0_i32_0 : i32, i32, i32
  }
  func.func @transform_7(%arg0: i32, %arg1: i32) -> (i32, i32, i32) {
    %c0_i32 = arith.constant 0 : i32
    %c0_i32_0 = arith.constant 0 : i32
    %c0_i32_1 = arith.constant 0 : i32
    return %arg1, %c0_i32, %c0_i32_0 : i32, i32, i32
  }
  func.func @transform_8(%arg0: i32, %arg1: i32) -> (i32, i32, i32) {
    %c0_i32 = arith.constant 0 : i32
    %c0_i32_0 = arith.constant 0 : i32
    %c0_i32_1 = arith.constant 0 : i32
    return %arg1, %c0_i32, %c0_i32_0 : i32, i32, i32
  }
  func.func @transform_9(%arg0: i32, %arg1: i32) -> (i32, i32) {
    %c0_i32 = arith.constant 0 : i32
    %c0_i32_0 = arith.constant 0 : i32
    %c0_i32_1 = arith.constant 0 : i32
    return %c0_i32, %c0_i32_0 : i32, i32
  }
  func.func @transform_10(%arg0: i32, %arg1: i32) -> (i32, i32) {
    %c0_i32 = arith.constant 0 : i32
    %c0_i32_0 = arith.constant 0 : i32
    %c0_i32_1 = arith.constant 0 : i32
    return %c0_i32, %c0_i32_0 : i32, i32
  }
  func.func @transform_11(%arg0: i32, %arg1: i32) -> (i32, i32, i32) {
    %c0_i32 = arith.constant 0 : i32
    %c0_i32_0 = arith.constant 0 : i32
    %c0_i32_1 = arith.constant 0 : i32
    return %arg0, %c0_i32, %c0_i32_0 : i32, i32, i32
  }
}

</mosaic_0001>

<llo_original>
// kernel: tpu_custom_call.1
$region0: #{tpu_custom_call.1}
  #allocation0 [shape = 'u32[]', space=smem, size = 0x4, offset = 0x4, fixed_abs, tag = 'smem constant byte address 0x4 - core index']
  #allocation1 [shape = 'u32[144,128]{1,0:T(1,128)}', space=vmem, size = 0x12000, scoped, tag = 'internal scratch']
  %s0 = inlined_call_operand.hbm [shape: f32[2,8,128], index: 0, kind: input, shape index: {}]
  %s1 = inlined_call_operand.vmem [shape: f32[2,1,128], index: 1, kind: input, shape index: {}]
  %s2 = inlined_call_operand.vmem [shape: f32[2,1,128], index: 2, kind: input, shape index: {}]
  %s3 = inlined_call_operand.hbm [shape: bf16[2,128,256], index: 3, kind: input, shape index: {}]
  %s4 = inlined_call_operand.vmem [shape: f32[2,3,128], index: 4, kind: input, shape index: {}]
  %s5 = inlined_call_operand.hbm [shape: bf16[2,128,128], index: 5, kind: input, shape index: {}]
  %s6 = inlined_call_operand.vmem [shape: f32[2,1,128], index: 6, kind: input, shape index: {}]
  %s7 = inlined_call_operand.hbm [shape: bf16[2,128,128], index: 7, kind: input, shape index: {}]
  %s8 = inlined_call_operand.vmem [shape: f32[2,1,128], index: 8, kind: input, shape index: {}]
  %s9 = inlined_call_operand.vmem [shape: f32[1,128], index: 9, kind: input, shape index: {}]
  %s10 = inlined_call_operand.vmem [shape: f32[1,128], index: 10, kind: input, shape index: {}]
  %s11 = inlined_call_operand.hbm [shape: f32[2,8,128], index: 11, kind: output, shape index: {}]
  %s12 = sld [smem:[#allocation0]]
  $region105: #{tpu_custom_call.1} parent=0
    _
  %s14 = ssub.s32 1, %s12
  %s15 = scalar_select 0, %s14, %s12
  $region1: #{tpu_custom_call.1} parent=0
    #allocation2 [shape = 'u8[8192]{0}', space=vmem, size = 0x2000, scoped, tag = 'input window, operand 0']
    #allocation3 [shape = 's32[2]{0}', space=sflag, size = 0x8, scoped, tag = 'scoped memory for tpu_custom_call.1']
    #allocation4 [shape = 's32[2]{0}', space=sflag, size = 0x8, scoped, tag = 'scoped memory for tpu_custom_call.1']
    #allocation5 [shape = 'u8[131072]{0}', space=vmem, size = 0x20000, scoped, tag = 'input window, operand 3']
    #allocation6 [shape = 's32[2]{0}', space=sflag, size = 0x8, scoped, tag = 'scoped memory for tpu_custom_call.1']
    #allocation7 [shape = 'u8[65536]{0}', space=vmem, size = 0x10000, scoped, tag = 'input window, operand 5']
    #allocation8 [shape = 'u8[65536]{0}', space=vmem, size = 0x10000, scoped, tag = 'input window, operand 7']
    #allocation9 [shape = 's32[2]{0}', space=sflag, size = 0x8, scoped, tag = 'scoped memory for tpu_custom_call.1']
    #allocation10 [shape = 'u8[8192]{0}', space=vmem, size = 0x2000, scoped, tag = 'output window, operand 0']
    %16 = vsyncpa [#allocation3], 0
    %s17 = scalar_lea.sflag [#allocation3], 1
    %18 = vsyncpa %s17, 0
    %19 = vsyncpa [#allocation6], 0
    %s20 = scalar_lea.sflag [#allocation6], 1
    %21 = vsyncpa %s20, 0
    %22 = vsyncpa [#allocation9], 0
    %s23 = scalar_lea.sflag [#allocation9], 1
    %24 = vsyncpa %s23, 0
    %25 = vsyncpa [#allocation4], 0
    %s26 = scalar_lea.sflag [#allocation4], 1
    %27 = vsyncpa %s26, 0
    loop: start=0, step=1, limit=6
    $region2: #{tpu_custom_call.1} parent=1 // loop_pre_header
      _
    $region3: #{tpu_custom_call.1} parent=1 // loop_header
      %s29 = sphi 0, %s33
      %p30 = scmp.ge.s32.totalorder %s29, 6
      %s36 = sphi 0, %s48
      %s37 = sphi 0, %s44
      %s38 = sphi 0, %s36
      %s39 = sphi 0, %s37
      %s40 = sphi 0, %s38
      %s41 = sphi 0, %s39
      %s51 = sphi 0, %s53
      %s54 = sphi 0, %s51
      %s55 = sphi 0, %s54
      %s71 = sphi 0, %s55
      %s77 = sphi 0, %s79
      %s80 = sphi 0, %s77
      %s81 = sphi 0, %s80
      %s97 = sphi 0, %s81
      %s103 = sphi 0, %s105
      %s106 = sphi 0, %s103
      %s107 = sphi 0, %s106
      %s123 = sphi 0, %s107
      %s129 = sphi 0, %s131
      %s132 = sphi 0, %s129
      %s133 = sphi 0, %s132
      %s149 = sphi 0, %s133
      %s155 = sphi 0, %s157
      %s158 = sphi 0, %s155
      %s159 = sphi 0, %s158
      %s175 = sphi 0, %s159
      %s181 = sphi 0, %s183
      %s184 = sphi 0, %s181
      %s185 = sphi 0, %s184
      %s201 = sphi 0, %s185
      %s207 = sphi 0, %s209
      %s210 = sphi 0, %s207
      %s211 = sphi 0, %s210
      %s227 = sphi 0, %s211
      %s233 = sphi 0, %s235
      %s236 = sphi 0, %s233
      %s237 = sphi 0, %s236
      %s253 = sphi 0, %s237
      %s259 = sphi 0, %s261
      %s262 = sphi 0, %s259
      %s263 = sphi 0, %s262
      %s279 = sphi 0, %s263
      %s283 = sphi 0, %s283
      %s285 = sphi 0, %s283
      %s286 = sphi 0, %s285
      %s300 = sphi 0, %s286
      %s304 = sphi 0, %s304
      %s306 = sphi 0, %s304
      %s307 = sphi 0, %s306
      %s321 = sphi 0, %s307
      %s327 = sphi 0, %s329
      %s330 = sphi 0, %s327
      %s331 = sphi 0, %s330
      %s347 = sphi 0, %s331
    $region4: #{tpu_custom_call.1} parent=1 // loop_header_branch
      %32 = sbr.rel (%p30) target = $region8
    $region5: #{tpu_custom_call.1} parent=1 // loop_body
      %s34 = ssub.s32 %s29, 1
      %s35 = ssub.s32 %s29, 2
      %s42 = sadd.s32 1, %s37
      %p43 = scmp.ge.s32.totalorder %s42, 2
      %s44 = scalar_select %p43, 0, %s42
      %s45 = sadd.s32 1, %s36
      %s46 = scalar_select %p43, %s45, %s36
      %p47 = scmp.ge.s32.totalorder %s46, 2
      %s48 = scalar_select %p47, 0, %s46
      %s49 = ssub.s32 %s36, %s48
      %p50 = scmp.eq.s32.totalorder %s49, 0
      %s52 = sadd.s32 %s51, 1
      %s53 = scalar_select %p50, %s51, %s52
      %p56 = pneg %p50
      %p57 = scmp.eq.s32.totalorder %s29, 3
      %p58 = por %p56, %p57
      %p59 = scmp.ne.s32.totalorder %s51, %s54
      %p60 = scmp.eq.s32.totalorder %s29, 0
      %p61 = por %p59, %p60
      %p62 = scmp.ne.s32.totalorder %s51, %s54
      %p63 = scmp.eq.s32.totalorder %s34, 3
      %p64 = por %p62, %p63
      %p65 = scmp.ne.s32.totalorder %s54, %s55
      %p66 = scmp.eq.s32.totalorder %s34, 0
      %p67 = por %p65, %p66
      %p68 = scmp.ne.s32.totalorder %s54, %s55
      %p69 = scmp.eq.s32.totalorder %s35, 3
      %p70 = por %p68, %p69
      %p72 = scmp.ne.s32.totalorder %s55, %s71
      %p73 = scmp.eq.s32.totalorder %s35, 0
      %p74 = por %p72, %p73
      %s75 = ssub.s32 %s37, %s44
      %p76 = scmp.eq.s32.totalorder %s75, 0
      %s78 = sadd.s32 %s77, 1
      %s79 = scalar_select %p76, %s77, %s78
      %p82 = pneg %p76
      %p83 = scmp.eq.s32.totalorder %s29, 3
      %p84 = por %p82, %p83
      %p85 = scmp.ne.s32.totalorder %s77, %s80
      %p86 = scmp.eq.s32.totalorder %s29, 0
      %p87 = por %p85, %p86
      %p88 = scmp.ne.s32.totalorder %s77, %s80
      %p89 = scmp.eq.s32.totalorder %s34, 3
      %p90 = por %p88, %p89
      %p91 = scmp.ne.s32.totalorder %s80, %s81
      %p92 = scmp.eq.s32.totalorder %s34, 0
      %p93 = por %p91, %p92
      %p94 = scmp.ne.s32.totalorder %s80, %s81
      %p95 = scmp.eq.s32.totalorder %s35, 3
      %p96 = por %p94, %p95
      %p98 = scmp.ne.s32.totalorder %s81, %s97
      %p99 = scmp.eq.s32.totalorder %s35, 0
      %p100 = por %p98, %p99
      %s101 = ssub.s32 %s37, %s44
      %p102 = scmp.eq.s32.totalorder %s101, 0
      %s104 = sadd.s32 %s103, 1
      %s105 = scalar_select %p102, %s103, %s104
      %p108 = pneg %p102
      %p109 = scmp.eq.s32.totalorder %s29, 3
      %p110 = por %p108, %p109
      %p111 = scmp.ne.s32.totalorder %s103, %s106
      %p112 = scmp.eq.s32.totalorder %s29, 0
      %p113 = por %p111, %p112
      %p114 = scmp.ne.s32.totalorder %s103, %s106
      %p115 = scmp.eq.s32.totalorder %s34, 3
      %p116 = por %p114, %p115
      %p117 = scmp.ne.s32.totalorder %s106, %s107
      %p118 = scmp.eq.s32.totalorder %s34, 0
      %p119 = por %p117, %p118
      %p120 = scmp.ne.s32.totalorder %s106, %s107
      %p121 = scmp.eq.s32.totalorder %s35, 3
      %p122 = por %p120, %p121
      %p124 = scmp.ne.s32.totalorder %s107, %s123
      %p125 = scmp.eq.s32.totalorder %s35, 0
      %p126 = por %p124, %p125
      %s127 = ssub.s32 %s37, %s44
      %p128 = scmp.eq.s32.totalorder %s127, 0
      %s130 = sadd.s32 %s129, 1
      %s131 = scalar_select %p128, %s129, %s130
      %p134 = pneg %p128
      %p135 = scmp.eq.s32.totalorder %s29, 3
      %p136 = por %p134, %p135
      %p137 = scmp.ne.s32.totalorder %s129, %s132
      %p138 = scmp.eq.s32.totalorder %s29, 0
      %p139 = por %p137, %p138
      %p140 = scmp.ne.s32.totalorder %s129, %s132
      %p141 = scmp.eq.s32.totalorder %s34, 3
      %p142 = por %p140, %p141
      %p143 = scmp.ne.s32.totalorder %s132, %s133
      %p144 = scmp.eq.s32.totalorder %s34, 0
      %p145 = por %p143, %p144
      %p146 = scmp.ne.s32.totalorder %s132, %s133
      %p147 = scmp.eq.s32.totalorder %s35, 3
      %p148 = por %p146, %p147
      %p150 = scmp.ne.s32.totalorder %s133, %s149
      %p151 = scmp.eq.s32.totalorder %s35, 0
      %p152 = por %p150, %p151
      %s153 = ssub.s32 %s37, %s44
      %p154 = scmp.eq.s32.totalorder %s153, 0
      %s156 = sadd.s32 %s155, 1
      %s157 = scalar_select %p154, %s155, %s156
      %p160 = pneg %p154
      %p161 = scmp.eq.s32.totalorder %s29, 3
      %p162 = por %p160, %p161
      %p163 = scmp.ne.s32.totalorder %s155, %s158
      %p164 = scmp.eq.s32.totalorder %s29, 0
      %p165 = por %p163, %p164
      %p166 = scmp.ne.s32.totalorder %s155, %s158
      %p167 = scmp.eq.s32.totalorder %s34, 3
      %p168 = por %p166, %p167
      %p169 = scmp.ne.s32.totalorder %s158, %s159
      %p170 = scmp.eq.s32.totalorder %s34, 0
      %p171 = por %p169, %p170
      %p172 = scmp.ne.s32.totalorder %s158, %s159
      %p173 = scmp.eq.s32.totalorder %s35, 3
      %p174 = por %p172, %p173
      %p176 = scmp.ne.s32.totalorder %s159, %s175
      %p177 = scmp.eq.s32.totalorder %s35, 0
      %p178 = por %p176, %p177
      %s179 = ssub.s32 %s37, %s44
      %p180 = scmp.eq.s32.totalorder %s179, 0
      %s182 = sadd.s32 %s181, 1
      %s183 = scalar_select %p180, %s181, %s182
      %p186 = pneg %p180
      %p187 = scmp.eq.s32.totalorder %s29, 3
      %p188 = por %p186, %p187
      %p189 = scmp.ne.s32.totalorder %s181, %s184
      %p190 = scmp.eq.s32.totalorder %s29, 0
      %p191 = por %p189, %p190
      %p192 = scmp.ne.s32.totalorder %s181, %s184
      %p193 = scmp.eq.s32.totalorder %s34, 3
      %p194 = por %p192, %p193
      %p195 = scmp.ne.s32.totalorder %s184, %s185
      %p196 = scmp.eq.s32.totalorder %s34, 0
      %p197 = por %p195, %p196
      %p198 = scmp.ne.s32.totalorder %s184, %s185
      %p199 = scmp.eq.s32.totalorder %s35, 3
      %p200 = por %p198, %p199
      %p202 = scmp.ne.s32.totalorder %s185, %s201
      %p203 = scmp.eq.s32.totalorder %s35, 0
      %p204 = por %p202, %p203
      %s205 = ssub.s32 %s37, %s44
      %p206 = scmp.eq.s32.totalorder %s205, 0
      %s208 = sadd.s32 %s207, 1
      %s209 = scalar_select %p206, %s207, %s208
      %p212 = pneg %p206
      %p213 = scmp.eq.s32.totalorder %s29, 3
      %p214 = por %p212, %p213
      %p215 = scmp.ne.s32.totalorder %s207, %s210
      %p216 = scmp.eq.s32.totalorder %s29, 0
      %p217 = por %p215, %p216
      %p218 = scmp.ne.s32.totalorder %s207, %s210
      %p219 = scmp.eq.s32.totalorder %s34, 3
      %p220 = por %p218, %p219
      %p221 = scmp.ne.s32.totalorder %s210, %s211
      %p222 = scmp.eq.s32.totalorder %s34, 0
      %p223 = por %p221, %p222
      %p224 = scmp.ne.s32.totalorder %s210, %s211
      %p225 = scmp.eq.s32.totalorder %s35, 3
      %p226 = por %p224, %p225
      %p228 = scmp.ne.s32.totalorder %s211, %s227
      %p229 = scmp.eq.s32.totalorder %s35, 0
      %p230 = por %p228, %p229
      %s231 = ssub.s32 %s37, %s44
      %p232 = scmp.eq.s32.totalorder %s231, 0
      %s234 = sadd.s32 %s233, 1
      %s235 = scalar_select %p232, %s233, %s234
      %p238 = pneg %p232
      %p239 = scmp.eq.s32.totalorder %s29, 3
      %p240 = por %p238, %p239
      %p241 = scmp.ne.s32.totalorder %s233, %s236
      %p242 = scmp.eq.s32.totalorder %s29, 0
      %p243 = por %p241, %p242
      %p244 = scmp.ne.s32.totalorder %s233, %s236
      %p245 = scmp.eq.s32.totalorder %s34, 3
      %p246 = por %p244, %p245
      %p247 = scmp.ne.s32.totalorder %s236, %s237
      %p248 = scmp.eq.s32.totalorder %s34, 0
      %p249 = por %p247, %p248
      %p250 = scmp.ne.s32.totalorder %s236, %s237
      %p251 = scmp.eq.s32.totalorder %s35, 3
      %p252 = por %p250, %p251
      %p254 = scmp.ne.s32.totalorder %s237, %s253
      %p255 = scmp.eq.s32.totalorder %s35, 0
      %p256 = por %p254, %p255
      %s257 = ssub.s32 %s37, %s44
      %p258 = scmp.eq.s32.totalorder %s257, 0
      %s260 = sadd.s32 %s259, 1
      %s261 = scalar_select %p258, %s259, %s260
      %p264 = pneg %p258
      %p265 = scmp.eq.s32.totalorder %s29, 3
      %p266 = por %p264, %p265
      %p267 = scmp.ne.s32.totalorder %s259, %s262
      %p268 = scmp.eq.s32.totalorder %s29, 0
      %p269 = por %p267, %p268
      %p270 = scmp.ne.s32.totalorder %s259, %s262
      %p271 = scmp.eq.s32.totalorder %s34, 3
      %p272 = por %p270, %p271
      %p273 = scmp.ne.s32.totalorder %s262, %s263
      %p274 = scmp.eq.s32.totalorder %s34, 0
      %p275 = por %p273, %p274
      %p276 = scmp.ne.s32.totalorder %s262, %s263
      %p277 = scmp.eq.s32.totalorder %s35, 3
      %p278 = por %p276, %p277
      %p280 = scmp.ne.s32.totalorder %s263, %s279
      %p281 = scmp.eq.s32.totalorder %s35, 0
      %p282 = por %p280, %p281
      %s284 = sadd.s32 %s283, 1
      %p287 = scmp.eq.s32.totalorder %s29, 3
      %p288 = scmp.ne.s32.totalorder %s283, %s285
      %p289 = scmp.eq.s32.totalorder %s29, 0
      %p290 = por %p288, %p289
      %p291 = scmp.ne.s32.totalorder %s283, %s285
      %p292 = scmp.eq.s32.totalorder %s34, 3
      %p293 = por %p291, %p292
      %p294 = scmp.ne.s32.totalorder %s285, %s286
      %p295 = scmp.eq.s32.totalorder %s34, 0
      %p296 = por %p294, %p295
      %p297 = scmp.ne.s32.totalorder %s285, %s286
      %p298 = scmp.eq.s32.totalorder %s35, 3
      %p299 = por %p297, %p298
      %p301 = scmp.ne.s32.totalorder %s286, %s300
      %p302 = scmp.eq.s32.totalorder %s35, 0
      %p303 = por %p301, %p302
      %s305 = sadd.s32 %s304, 1
      %p308 = scmp.eq.s32.totalorder %s29, 3
      %p309 = scmp.ne.s32.totalorder %s304, %s306
      %p310 = scmp.eq.s32.totalorder %s29, 0
      %p311 = por %p309, %p310
      %p312 = scmp.ne.s32.totalorder %s304, %s306
      %p313 = scmp.eq.s32.totalorder %s34, 3
      %p314 = por %p312, %p313
      %p315 = scmp.ne.s32.totalorder %s306, %s307
      %p316 = scmp.eq.s32.totalorder %s34, 0
      %p317 = por %p315, %p316
      %p318 = scmp.ne.s32.totalorder %s306, %s307
      %p319 = scmp.eq.s32.totalorder %s35, 3
      %p320 = por %p318, %p319
      %p322 = scmp.ne.s32.totalorder %s307, %s321
      %p323 = scmp.eq.s32.totalorder %s35, 0
      %p324 = por %p322, %p323
      %s325 = ssub.s32 %s36, %s48
      %p326 = scmp.eq.s32.totalorder %s325, 0
      %s328 = sadd.s32 %s327, 1
      %s329 = scalar_select %p326, %s327, %s328
      %p332 = pneg %p326
      %p333 = scmp.eq.s32.totalorder %s29, 3
      %p334 = por %p332, %p333
      %p335 = scmp.ne.s32.totalorder %s327, %s330
      %p336 = scmp.eq.s32.totalorder %s29, 0
      %p337 = por %p335, %p336
      %p338 = scmp.ne.s32.totalorder %s327, %s330
      %p339 = scmp.eq.s32.totalorder %s34, 3
      %p340 = por %p338, %p339
      %p341 = scmp.ne.s32.totalorder %s330, %s331
      %p342 = scmp.eq.s32.totalorder %s34, 0
      %p343 = por %p341, %p342
      %p344 = scmp.ne.s32.totalorder %s330, %s331
      %p345 = scmp.eq.s32.totalorder %s35, 3
      %p346 = por %p344, %p345
      %p348 = scmp.ne.s32.totalorder %s331, %s347
      %p349 = scmp.eq.s32.totalorder %s35, 0
      %p350 = por %p348, %p349
      %p351 = scmp.le.s32.totalorder 1, %s29
      %p352 = scmp.lt.s32.totalorder %s29, 5
      %p353 = pnand %p351, %p352
      %p354 = pneg %p353
      // Predicated region
      $region9: #{tpu_custom_call.1} parent=5 // pred_check
        _
      $region10: #{tpu_custom_call.1} parent=5 // pred_check_branch
        %356 = sbr.rel (%p353) target = $region12
      $region11: #{tpu_custom_call.1} parent=5 // pred_region
        %s357 = ssub.s32 %s29, 1
        // Predicated region
        $region13: #{tpu_custom_call.1} parent=11 // pred_check
          %p358 = pneg %p296
        $region14: #{tpu_custom_call.1} parent=11 // pred_check_branch
          %360 = sbr.rel (%p358) target = $region16
        $region15: #{tpu_custom_call.1} parent=11 // pred_region
          _
        $region16: #{tpu_custom_call.1} parent=11 // pred_fallthru
          _
        // Predicated region
        $region17: #{tpu_custom_call.1} parent=11 // pred_check
          %p361 = pneg %p317
        $region18: #{tpu_custom_call.1} parent=11 // pred_check_branch
          %363 = sbr.rel (%p361) target = $region20
        $region19: #{tpu_custom_call.1} parent=11 // pred_region
          _
        $region20: #{tpu_custom_call.1} parent=11 // pred_fallthru
          _
      $region12: #{tpu_custom_call.1} parent=5 // pred_fallthru
        _
      %p364 = scmp.lt.s32.totalorder %s29, 4
      // Predicated region
      $region21: #{tpu_custom_call.1} parent=5 // pred_check
        %p365 = pneg %p364
      $region22: #{tpu_custom_call.1} parent=5 // pred_check_branch
        %367 = sbr.rel (%p365) target = $region24
      $region23: #{tpu_custom_call.1} parent=5 // pred_region
        // Predicated region
        $region25: #{tpu_custom_call.1} parent=23 // pred_check
          %p368 = pneg %p61
        $region26: #{tpu_custom_call.1} parent=23 // pred_check_branch
          %370 = sbr.rel (%p368) target = $region28
        $region27: #{tpu_custom_call.1} parent=23 // pred_region
          %s371 = sand.u32 %s51, 1
          %s372 = scalar_lea.sflag [#allocation3], %s371
          %s373 = sand.u32 %s51, 1
          %s374 = smul.addr %s373, 8
          %s375 = scalar_lea.vmem [#allocation2], %s374
          %s377 = ssub.s32 128, 128
          %378 = vsyncadd %s372, %s377
          %s379 = smul.addr %s36, 128
          %s380 = scalar_lea.hbm %s0, %s379
          %s382 = sshll.u32 %s375, 4
          %s383 = int_to_ptr.vmem [resolvable:$true] %s382
          %385 = dma.hbm_to_vmem [thread:$0]  %s380, 128, %s383, %s372
        $region28: #{tpu_custom_call.1} parent=23 // pred_fallthru
          _
        // Predicated region
        $region29: #{tpu_custom_call.1} parent=23 // pred_check
          %p386 = pneg %p87
        $region30: #{tpu_custom_call.1} parent=23 // pred_check_branch
          %388 = sbr.rel (%p386) target = $region32
        $region31: #{tpu_custom_call.1} parent=23 // pred_region
          %p389 = scmp.lt.s32.totalorder %s37, 1
          %s390 = scalar_select %p389, %s37, 1
          %s391 = scalar_lea.vmem %s1, %s390
        $region32: #{tpu_custom_call.1} parent=23 // pred_fallthru
          _
        // Predicated region
        $region33: #{tpu_custom_call.1} parent=23 // pred_check
          %p392 = pneg %p113
        $region34: #{tpu_custom_call.1} parent=23 // pred_check_branch
          %394 = sbr.rel (%p392) target = $region36
        $region35: #{tpu_custom_call.1} parent=23 // pred_region
          %p395 = scmp.lt.s32.totalorder %s37, 1
          %s396 = scalar_select %p395, %s37, 1
          %s397 = scalar_lea.vmem %s2, %s396
        $region36: #{tpu_custom_call.1} parent=23 // pred_fallthru
          _
        // Predicated region
        $region37: #{tpu_custom_call.1} parent=23 // pred_check
          %p398 = pneg %p139
        $region38: #{tpu_custom_call.1} parent=23 // pred_check_branch
          %400 = sbr.rel (%p398) target = $region40
        $region39: #{tpu_custom_call.1} parent=23 // pred_region
          %s401 = sand.u32 %s29, 1
          %s402 = scalar_lea.sflag [#allocation6], %s401
          %s403 = sand.u32 %s129, 1
          %s404 = smul.addr %s403, 128
          %s405 = scalar_lea.vmem [#allocation5], %s404
          %s407 = ssub.s32 2048, 2048
          %408 = vsyncadd %s402, %s407
          %s409 = smul.addr %s37, 32
          %s410 = smul.addr %s409, 64
          %s411 = scalar_lea.hbm %s3, %s410
          %s412 = sshll.u32 %s405, 4
          %s413 = int_to_ptr.vmem [resolvable:$true] %s412
          %418 = dma.hbm_to_vmem [thread:$0]  %s411, 2048, %s413, %s402, 128, 128, 8
        $region40: #{tpu_custom_call.1} parent=23 // pred_fallthru
          _
        // Predicated region
        $region41: #{tpu_custom_call.1} parent=23 // pred_check
          %p419 = pneg %p165
        $region42: #{tpu_custom_call.1} parent=23 // pred_check_branch
          %421 = sbr.rel (%p419) target = $region44
        $region43: #{tpu_custom_call.1} parent=23 // pred_region
          %p422 = scmp.lt.s32.totalorder %s37, 1
          %s423 = scalar_select %p422, %s37, 1
          %s424 = smul.addr %s423, 4
          %s425 = scalar_lea.vmem %s4, %s424
        $region44: #{tpu_custom_call.1} parent=23 // pred_fallthru
          _
        // Predicated region
        $region45: #{tpu_custom_call.1} parent=23 // pred_check
          %p426 = pneg %p191
        $region46: #{tpu_custom_call.1} parent=23 // pred_check_branch
          %428 = sbr.rel (%p426) target = $region48
        $region47: #{tpu_custom_call.1} parent=23 // pred_region
          %s429 = sand.u32 %s29, 1
          %s430 = scalar_lea.sflag [#allocation6], %s429
          %s431 = sand.u32 %s181, 1
          %s432 = smul.addr %s431, 64
          %s433 = scalar_lea.vmem [#allocation7], %s432
          %s435 = ssub.s32 1024, 1024
          %436 = vsyncadd %s430, %s435
          %s437 = smul.addr %s37, 16
          %s438 = smul.addr %s437, 64
          %s439 = scalar_lea.hbm %s5, %s438
          %s440 = sshll.u32 %s433, 4
          %s441 = int_to_ptr.vmem [resolvable:$true] %s440
          %446 = dma.hbm_to_vmem [thread:$0]  %s439, 1024, %s441, %s430, 64, 64, 4
        $region48: #{tpu_custom_call.1} parent=23 // pred_fallthru
          _
        // Predicated region
        $region49: #{tpu_custom_call.1} parent=23 // pred_check
          %p447 = pneg %p217
        $region50: #{tpu_custom_call.1} parent=23 // pred_check_branch
          %449 = sbr.rel (%p447) target = $region52
        $region51: #{tpu_custom_call.1} parent=23 // pred_region
          %p450 = scmp.lt.s32.totalorder %s37, 1
          %s451 = scalar_select %p450, %s37, 1
          %s452 = scalar_lea.vmem %s6, %s451
        $region52: #{tpu_custom_call.1} parent=23 // pred_fallthru
          _
        // Predicated region
        $region53: #{tpu_custom_call.1} parent=23 // pred_check
          %p453 = pneg %p243
        $region54: #{tpu_custom_call.1} parent=23 // pred_check_branch
          %455 = sbr.rel (%p453) target = $region56
        $region55: #{tpu_custom_call.1} parent=23 // pred_region
          %s456 = sand.u32 %s233, 1
          %s457 = scalar_lea.sflag [#allocation9], %s456
          %s458 = sand.u32 %s233, 1
          %s459 = smul.addr %s458, 64
          %s460 = scalar_lea.vmem [#allocation8], %s459
          %s462 = ssub.s32 1024, 1024
          %463 = vsyncadd %s457, %s462
          %s464 = smul.addr %s37, 16
          %s465 = smul.addr %s464, 64
          %s466 = scalar_lea.hbm %s7, %s465
          %s467 = sshll.u32 %s460, 4
          %s468 = int_to_ptr.vmem [resolvable:$true] %s467
          %473 = dma.hbm_to_vmem [thread:$0]  %s466, 1024, %s468, %s457, 64, 64, 4
        $region56: #{tpu_custom_call.1} parent=23 // pred_fallthru
          _
        // Predicated region
        $region57: #{tpu_custom_call.1} parent=23 // pred_check
          %p474 = pneg %p269
        $region58: #{tpu_custom_call.1} parent=23 // pred_check_branch
          %476 = sbr.rel (%p474) target = $region60
        $region59: #{tpu_custom_call.1} parent=23 // pred_region
          %p477 = scmp.lt.s32.totalorder %s37, 1
          %s478 = scalar_select %p477, %s37, 1
          %s479 = scalar_lea.vmem %s8, %s478
        $region60: #{tpu_custom_call.1} parent=23 // pred_fallthru
          _
      $region24: #{tpu_custom_call.1} parent=5 // pred_fallthru
        _
      %p480 = scmp.le.s32.totalorder 1, %s29
      %p481 = scmp.lt.s32.totalorder %s29, 5
      %p482 = pnand %p480, %p481
      %p483 = pneg %p482
      // Predicated region
      $region61: #{tpu_custom_call.1} parent=5 // pred_check
        _
      $region62: #{tpu_custom_call.1} parent=5 // pred_check_branch
        %485 = sbr.rel (%p482) target = $region64
      $region63: #{tpu_custom_call.1} parent=5 // pred_region
        %s486 = ssub.s32 %s29, 1
        %s487 = sand.u32 %s54, 1
        %s488 = scalar_lea.sflag [#allocation3], %s487
        %s489 = sand.u32 %s54, 1
        %s490 = smul.addr %s489, 8
        %s491 = scalar_lea.vmem [#allocation2], %s490
        // Predicated region
        $region65: #{tpu_custom_call.1} parent=63 // pred_check
          %p492 = pneg %p67
        $region66: #{tpu_custom_call.1} parent=63 // pred_check_branch
          %494 = sbr.rel (%p492) target = $region68
        $region67: #{tpu_custom_call.1} parent=63 // pred_region
          %495 = dma.done %s488, 128
        $region68: #{tpu_custom_call.1} parent=63 // pred_fallthru
          _
        %s496 = sand.u32 %s34, 1
        %s497 = scalar_lea.sflag [#allocation6], %s496
        %s498 = sand.u32 %s132, 1
        %s499 = smul.addr %s498, 128
        %s500 = scalar_lea.vmem [#allocation5], %s499
        // Predicated region
        $region69: #{tpu_custom_call.1} parent=63 // pred_check
          %p501 = pneg %p145
        $region70: #{tpu_custom_call.1} parent=63 // pred_check_branch
          %503 = sbr.rel (%p501) target = $region72
        $region71: #{tpu_custom_call.1} parent=63 // pred_region
          %504 = dma.done %s497, 2048
        $region72: #{tpu_custom_call.1} parent=63 // pred_fallthru
          _
        %s505 = sand.u32 %s34, 1
        %s506 = scalar_lea.sflag [#allocation6], %s505
        %s507 = sand.u32 %s184, 1
        %s508 = smul.addr %s507, 64
        %s509 = scalar_lea.vmem [#allocation7], %s508
        // Predicated region
        $region73: #{tpu_custom_call.1} parent=63 // pred_check
          %p510 = pneg %p197
        $region74: #{tpu_custom_call.1} parent=63 // pred_check_branch
          %512 = sbr.rel (%p510) target = $region76
        $region75: #{tpu_custom_call.1} parent=63 // pred_region
          %513 = dma.done %s506, 1024
        $region76: #{tpu_custom_call.1} parent=63 // pred_fallthru
          _
        %s514 = sand.u32 %s236, 1
        %s515 = scalar_lea.sflag [#allocation9], %s514
        %s516 = sand.u32 %s236, 1
        %s517 = smul.addr %s516, 64
        %s518 = scalar_lea.vmem [#allocation8], %s517
        // Predicated region
        $region77: #{tpu_custom_call.1} parent=63 // pred_check
          %p519 = pneg %p249
        $region78: #{tpu_custom_call.1} parent=63 // pred_check_branch
          %521 = sbr.rel (%p519) target = $region80
        $region79: #{tpu_custom_call.1} parent=63 // pred_region
          %522 = dma.done %s515, 1024
        $region80: #{tpu_custom_call.1} parent=63 // pred_fallthru
          _
        %s523 = sand.u32 %s54, 1
        %s524 = scalar_lea.sflag [#allocation3], %s523
        %s525 = sand.u32 %s54, 1
        %s526 = smul.addr %s525, 8
        %s527 = scalar_lea.vmem [#allocation2], %s526
        %p528 = pneg %p67
        %p529 = pneg %p64
        %p530 = scmp.lt.s32.totalorder %s39, 1
        %s531 = scalar_select %p530, %s39, 1
        %s532 = scalar_lea.vmem %s1, %s531
        %p533 = pneg %p93
        %p534 = pneg %p90
        %p535 = scmp.lt.s32.totalorder %s39, 1
        %s536 = scalar_select %p535, %s39, 1
        %s537 = scalar_lea.vmem %s2, %s536
        %p538 = pneg %p119
        %p539 = pneg %p116
        %s540 = sand.u32 %s34, 1
        %s541 = scalar_lea.sflag [#allocation6], %s540
        %s542 = sand.u32 %s132, 1
        %s543 = smul.addr %s542, 128
        %s544 = scalar_lea.vmem [#allocation5], %s543
        %p545 = pneg %p145
        %p546 = pneg %p142
        %p547 = scmp.lt.s32.totalorder %s39, 1
        %s548 = scalar_select %p547, %s39, 1
        %s549 = smul.addr %s548, 4
        %s550 = scalar_lea.vmem %s4, %s549
        %p551 = pneg %p171
        %p552 = pneg %p168
        %s553 = sand.u32 %s34, 1
        %s554 = scalar_lea.sflag [#allocation6], %s553
        %s555 = sand.u32 %s184, 1
        %s556 = smul.addr %s555, 64
        %s557 = scalar_lea.vmem [#allocation7], %s556
        %p558 = pneg %p197
        %p559 = pneg %p194
        %p560 = scmp.lt.s32.totalorder %s39, 1
        %s561 = scalar_select %p560, %s39, 1
        %s562 = scalar_lea.vmem %s6, %s561
        %p563 = pneg %p223
        %p564 = pneg %p220
        %s565 = sand.u32 %s236, 1
        %s566 = scalar_lea.sflag [#allocation9], %s565
        %s567 = sand.u32 %s236, 1
        %s568 = smul.addr %s567, 64
        %s569 = scalar_lea.vmem [#allocation8], %s568
        %p570 = pneg %p249
        %p571 = pneg %p246
        %p572 = scmp.lt.s32.totalorder %s39, 1
        %s573 = scalar_select %p572, %s39, 1
        %s574 = scalar_lea.vmem %s8, %s573
        %p575 = pneg %p275
        %p576 = pneg %p272
        %p577 = pneg %p296
        %p578 = pneg %p293
        %p579 = pneg %p317
        %p580 = pneg %p314
        %p581 = pneg %p343
        %p582 = pneg %p340
        %s583 = sand.u32 %s330, 1
        %s584 = scalar_lea.sflag [#allocation4], %s583
        %s585 = sand.u32 %s330, 1
        %s586 = smul.addr %s585, 8
        %s587 = scalar_lea.vmem [#allocation10], %s586
        %p588 = scmp.lt.s32.totalorder %s39, 1
        %s589 = scalar_select %p588, %s39, 1
        %s590 = scalar_lea.vmem %s1, %s589
        %p591 = scmp.lt.s32.totalorder %s39, 1
        %s592 = scalar_select %p591, %s39, 1
        %s593 = scalar_lea.vmem %s2, %s592
        %p594 = scmp.lt.s32.totalorder %s39, 1
        %s595 = scalar_select %p594, %s39, 1
        %s596 = smul.addr %s595, 4
        %s597 = scalar_lea.vmem %s4, %s596
        %p598 = scmp.lt.s32.totalorder %s39, 1
        %s599 = scalar_select %p598, %s39, 1
        %s600 = scalar_lea.vmem %s6, %s599
        %p601 = scmp.lt.s32.totalorder %s39, 1
        %s602 = scalar_select %p601, %s39, 1
        %s603 = scalar_lea.vmem %s8, %s602
        %v605 = vlaneseq
        %v606 = vand.u32 %v605, 127
        %vm607 = vcmp.lt.s32.totalorder %v606, 32
        %v608 = vsel %vm607, 1, 0
        %v609 = vcvt.s32.f32 %v608
        %p610 = scmp.eq.s32.totalorder %s39, 0
        // Predicated region
        $region81: #{tpu_custom_call.1} parent=63 // pred_check
          %p611 = pneg %p610
        $region82: #{tpu_custom_call.1} parent=63 // pred_check_branch
          %613 = sbr.rel (%p611) target = $region84
        $region83: #{tpu_custom_call.1} parent=63 // pred_region
          %v614 = vld [vmem:[%s491] sm:$0xff]
          %615 = vst [vmem:[%s587] sm:$0xff] %v614
        $region84: #{tpu_custom_call.1} parent=63 // pred_fallthru
          _
        %v616 = vld [vmem:[%s587] sm:$0xff]
        %v617 = vld [vmem:[%s590] sm:$0x1]
        %v618 = vld [vmem:[%s593] sm:$0x1]
        %619 = vadd.xlane.f32.xlu0 %v616
        %v620 = vpop.xlane.xlu0 %619
        %v621 = vmul.f32 %v620, 0.03125
        %v622 = vsub.f32 %v616, %v621
        %v623 = vmul.f32 %v622, %v609
        %v624 = vmul.f32 %v623, %v623
        %625 = vadd.xlane.f32.xlu0 %v624
        %v626 = vpop.xlane.xlu0 %625
        %v627 = vmul.f32 %v626, 0.03125
        %v628 = vadd.f32 %v627, 1e-05
        %v629 = vrsqrt.pop %v628
        %v630 = vmul.f32 %v623, %v629
        %v632 = vlaneseq
        %v633 = vshrl.u32 %v632, 7
        %v634 = vsub.s32 0, %v633
        %v635 = vrot.slane %v617, %v634
        %v637 = vmul.f32 %v630, %v635
        %v639 = vlaneseq
        %v640 = vshrl.u32 %v639, 7
        %v641 = vsub.s32 0, %v640
        %v642 = vrot.slane %v618, %v641
        %v644 = vadd.f32 %v637, %v642
        %v645 = vld [vmem:[%s500] sm:$0xff]
        %v646 = vld [vmem:[%s500 + $0x8] sm:$0xff]
        %v647 = vld [vmem:[%s500 + $0x10] sm:$0xff]
        %v648 = vld [vmem:[%s500 + $0x18] sm:$0xff]
        %v649 = vld [vmem:[%s500 + $0x20] sm:$0xff]
        %v650 = vld [vmem:[%s500 + $0x28] sm:$0xff]
        %v651 = vld [vmem:[%s500 + $0x30] sm:$0xff]
        %v652 = vld [vmem:[%s500 + $0x38] sm:$0xff]
        %v653 = vld [vmem:[%s500 + $0x40] sm:$0xff]
        %v654 = vld [vmem:[%s500 + $0x48] sm:$0xff]
        %v655 = vld [vmem:[%s500 + $0x50] sm:$0xff]
        %v656 = vld [vmem:[%s500 + $0x58] sm:$0xff]
        %v657 = vld [vmem:[%s500 + $0x60] sm:$0xff]
        %v658 = vld [vmem:[%s500 + $0x68] sm:$0xff]
        %v659 = vld [vmem:[%s500 + $0x70] sm:$0xff]
        %v660 = vld [vmem:[%s500 + $0x78] sm:$0xff]
        %v661 = vpack.c.bf16 %v644, %v644
        %v678 = vunpack.c.l.b16 %v645
        %v679 = vunpack.c.h.b16 %v645
        %v680 = vunpack.c.l.b16 %v646
        %v681 = vunpack.c.h.b16 %v646
        %v682 = vunpack.c.l.b16 %v647
        %v683 = vunpack.c.h.b16 %v647
        %v684 = vunpack.c.l.b16 %v648
        %v685 = vunpack.c.h.b16 %v648
        %v686 = vunpack.c.l.b16 %v649
        %v687 = vunpack.c.h.b16 %v649
        %v688 = vunpack.c.l.b16 %v650
        %v689 = vunpack.c.h.b16 %v650
        %v690 = vunpack.c.l.b16 %v651
        %v691 = vunpack.c.h.b16 %v651
        %v692 = vunpack.c.l.b16 %v652
        %v693 = vunpack.c.h.b16 %v652
        %v694 = vunpack.c.l.b16 %v653
        %v695 = vunpack.c.h.b16 %v653
        %v696 = vunpack.c.l.b16 %v654
        %v697 = vunpack.c.h.b16 %v654
        %v698 = vunpack.c.l.b16 %v655
        %v699 = vunpack.c.h.b16 %v655
        %v700 = vunpack.c.l.b16 %v656
        %v701 = vunpack.c.h.b16 %v656
        %v702 = vunpack.c.l.b16 %v657
        %v703 = vunpack.c.h.b16 %v657
        %v704 = vunpack.c.l.b16 %v658
        %v705 = vunpack.c.h.b16 %v658
        %v706 = vunpack.c.l.b16 %v659
        %v707 = vunpack.c.h.b16 %v659
        %v708 = vunpack.c.l.b16 %v660
        %v709 = vunpack.c.h.b16 %v660
        %v710 = vpack.c.b16 %v680, %v678
        %v711 = vpack.c.b16 %v681, %v679
        %v712 = vpack.c.b16 %v684, %v682
        %v713 = vpack.c.b16 %v685, %v683
        %v714 = vpack.c.b16 %v688, %v686
        %v715 = vpack.c.b16 %v689, %v687
        %v716 = vpack.c.b16 %v692, %v690
        %v717 = vpack.c.b16 %v693, %v691
        %v718 = vpack.c.b16 %v696, %v694
        %v719 = vpack.c.b16 %v697, %v695
        %v720 = vpack.c.b16 %v700, %v698
        %v721 = vpack.c.b16 %v701, %v699
        %v722 = vpack.c.b16 %v704, %v702
        %v723 = vpack.c.b16 %v705, %v703
        %v724 = vpack.c.b16 %v708, %v706
        %v725 = vpack.c.b16 %v709, %v707
        %742 = vmatprep.subr.bf16.mxu0 %v725
        %743 = vmatpush1.bf16.msra.mxu0 %v724
        %744 = vmatprep.subr.bf16.mxu0 %v723
        %745 = vmatpush1.bf16.msra.mxu0 %v722
        %746 = vmatprep.subr.bf16.mxu0 %v721
        %747 = vmatpush1.bf16.msra.mxu0 %v720
        %748 = vmatprep.subr.bf16.mxu0 %v719
        %749 = vmatpush1.bf16.msra.mxu0 %v718
        %750 = vmatprep.subr.bf16.mxu0 %v717
        %751 = vmatpush1.bf16.msra.mxu0 %v716
        %752 = vmatprep.subr.bf16.mxu0 %v715
        %753 = vmatpush1.bf16.msra.mxu0 %v714
        %754 = vmatprep.subr.bf16.mxu0 %v713
        %755 = vmatpush1.bf16.msra.mxu0 %v712
        %756 = vmatprep.subr.bf16.mxu0 %v711
        %757 = vmatpush1.bf16.msra.mxu0 %v710
        %758 = vmatprep.subr.bf16.mxu0 0
        %759 = vmatpush2.bf16.msra.mxu0 0
        %760 = vmatprep.subr.bf16.mxu0 0
        %761 = vmatpush2.bf16.msra.mxu0 0
        %762 = vmatprep.subr.bf16.mxu0 0
        %763 = vmatpush2.bf16.msra.mxu0 0
        %764 = vmatprep.subr.bf16.mxu0 0
        %765 = vmatpush2.bf16.msra.mxu0 0
        %766 = vmatprep.subr.bf16.mxu0 0
        %767 = vmatpush2.bf16.msra.mxu0 0
        %768 = vmatprep.subr.bf16.mxu0 0
        %769 = vmatpush2.bf16.msra.mxu0 0
        %770 = vmatprep.subr.bf16.mxu0 0
        %771 = vmatpush2.bf16.msra.mxu0 0
        %772 = vmatprep.subr.bf16.mxu0 0
        %773 = vmatpush2.bf16.msra.mxu0 0
        %774 = vmatprep.mubr.bf16.mxu0 0
        %775 = vmatmul.mubr.bf16.gmra.mxu0 %v661
        %v776 = vpop.f32.mrf.mxu0
        %v777 = vadd.f32 0.0, %v776
        %v778 = vpop.f32.mrf.mxu0
        %v779 = vadd.f32 0.0, %v778
        %v780 = vpop.f32.mrf.mxu0
        %v781 = vpop.f32.mrf.mxu0
        %782 = vdwg.mxu0
        %v783 = vlaneseq
        %v784 = vshrl.u32 %v783, 7
        %vm785 = vcmp.lt.s32.totalorder %v784, 0
        %v786 = vsub.s32 0, %v784
        %v787 = vsel %vm785, %v786, %v784
        %v788 = vshrl.u32 %v787, 3
        %v789 = vand.u32 %v787, 7
        %v790 = vsub.s32 0, %v789
        %v791 = vsel %vm785, %v790, %v789
        %vm792 = vcmp.ne.s32.totalorder %v791, 0
        %vm793 = vcmp.lt.s32.totalorder %v791, 0
        %vm794 = vmand %vm793, %vm792
        %v795 = vadd.s32 %v791, 8
        %v796 = vsel %vm794, %v795, %v791
        %vm797 = vcmp.eq.s32.totalorder %v796, 0
        %v798 = vrot.slane %v777, 7
        %v799 = vsel %vm797, 1, 0
        %vm800 = vcmp.eq.s32.totalorder %v799, 1
        %v801 = vsel %vm800, 0.0, %v798
        %vm802 = vcmp.eq.s32.totalorder %v796, 7
        %v803 = vrot.slane %v777, 1
        %v804 = vsel %vm802, 1, 0
        %vm805 = vcmp.eq.s32.totalorder %v804, 1
        %v806 = vsel %vm805, 0.0, %v803
        %v807 = vld [vmem:[%s597] sm:$0x7]
        %v808 = vlaneseq
        %v809 = vshrl.u32 %v808, 7
        %v810 = vsub.s32 0, %v809
        %v811 = vrot.slane %v807, %v810
        %v812 = vmul.f32 %v801, %v811
        %v813 = vlaneseq
        %v814 = vshrl.u32 %v813, 7
        %v815 = vsub.s32 1, %v814
        %v816 = vrot.slane %v807, %v815
        %v817 = vmul.f32 %v777, %v816
        %v818 = vadd.f32 %v812, %v817
        %v819 = vlaneseq
        %v820 = vshrl.u32 %v819, 7
        %v821 = vsub.s32 2, %v820
        %v822 = vrot.slane %v807, %v821
        %v823 = vmul.f32 %v806, %v822
        %v824 = vadd.f32 %v818, %v823
        %v825 = vxor.u32 %v824, 2147483648
        %v826 = vmul.f32 %v825, 1.442695
        %v827 = vpow.pop %v826
        %v828 = vadd.f32 %v827, 1.0
        %v829 = vrcp.pop %v828
        %v830 = vmul.f32 1.0, %v829
        %v831 = vmul.f32 %v824, %v830
        %v832 = vld [vmem:[%s509] sm:$0xf]
        %v833 = vld [vmem:[%s509 + $0x4] sm:$0xf]
        %v834 = vld [vmem:[%s509 + $0x8] sm:$0xf]
        %v835 = vld [vmem:[%s509 + $0xc] sm:$0xf]
        %v836 = vld [vmem:[%s509 + $0x10] sm:$0xf]
        %v837 = vld [vmem:[%s509 + $0x14] sm:$0xf]
        %v838 = vld [vmem:[%s509 + $0x18] sm:$0xf]
        %v839 = vld [vmem:[%s509 + $0x1c] sm:$0xf]
        %v840 = vld [vmem:[%s509 + $0x20] sm:$0xf]
        %v841 = vld [vmem:[%s509 + $0x24] sm:$0xf]
        %v842 = vld [vmem:[%s509 + $0x28] sm:$0xf]
        %v843 = vld [vmem:[%s509 + $0x2c] sm:$0xf]
        %v844 = vld [vmem:[%s509 + $0x30] sm:$0xf]
        %v845 = vld [vmem:[%s509 + $0x34] sm:$0xf]
        %v846 = vld [vmem:[%s509 + $0x38] sm:$0xf]
        %v847 = vld [vmem:[%s509 + $0x3c] sm:$0xf]
        %v848 = vpack.c.bf16 %v831, %v831
        %v849 = vld [vmem:[%s600] sm:$0x1]
        %v851 = vlaneseq
        %v852 = vshrl.u32 %v851, 7
        %v853 = vsub.s32 0, %v852
        %v854 = vrot.slane %v849, %v853
        %v872 = vunpack.c.l.b16 %v832
        %v873 = vunpack.c.l.b16 %v833
        %v874 = vunpack.c.l.b16 %v834
        %v875 = vunpack.c.l.b16 %v835
        %v876 = vunpack.c.l.b16 %v836
        %v877 = vunpack.c.l.b16 %v837
        %v878 = vunpack.c.l.b16 %v838
        %v879 = vunpack.c.l.b16 %v839
        %v880 = vunpack.c.l.b16 %v840
        %v881 = vunpack.c.l.b16 %v841
        %v882 = vunpack.c.l.b16 %v842
        %v883 = vunpack.c.l.b16 %v843
        %v884 = vunpack.c.l.b16 %v844
        %v885 = vunpack.c.l.b16 %v845
        %v886 = vunpack.c.l.b16 %v846
        %v887 = vunpack.c.l.b16 %v847
        %v888 = vpack.c.b16 %v873, %v872
        %v889 = vpack.c.b16 %v875, %v874
        %v890 = vpack.c.b16 %v877, %v876
        %v891 = vpack.c.b16 %v879, %v878
        %v892 = vpack.c.b16 %v881, %v880
        %v893 = vpack.c.b16 %v883, %v882
        %v894 = vpack.c.b16 %v885, %v884
        %v895 = vpack.c.b16 %v887, %v886
        %904 = vmatprep.subr.bf16.mxu0 0
        %905 = vmatpush1.bf16.msra.mxu0 %v895
        %906 = vmatprep.subr.bf16.mxu0 0
        %907 = vmatpush1.bf16.msra.mxu0 %v894
        %908 = vmatprep.subr.bf16.mxu0 0
        %909 = vmatpush1.bf16.msra.mxu0 %v893
        %910 = vmatprep.subr.bf16.mxu0 0
        %911 = vmatpush1.bf16.msra.mxu0 %v892
        %912 = vmatprep.subr.bf16.mxu0 0
        %913 = vmatpush1.bf16.msra.mxu0 %v891
        %914 = vmatprep.subr.bf16.mxu0 0
        %915 = vmatpush1.bf16.msra.mxu0 %v890
        %916 = vmatprep.subr.bf16.mxu0 0
        %917 = vmatpush1.bf16.msra.mxu0 %v889
        %918 = vmatprep.subr.bf16.mxu0 0
        %919 = vmatpush1.bf16.msra.mxu0 %v888
        %920 = vmatprep.subr.bf16.mxu0 0
        %921 = vmatpush2.bf16.msra.mxu0 0
        %922 = vmatprep.subr.bf16.mxu0 0
        %923 = vmatpush2.bf16.msra.mxu0 0
        %924 = vmatprep.subr.bf16.mxu0 0
        %925 = vmatpush2.bf16.msra.mxu0 0
        %926 = vmatprep.subr.bf16.mxu0 0
        %927 = vmatpush2.bf16.msra.mxu0 0
        %928 = vmatprep.subr.bf16.mxu0 0
        %929 = vmatpush2.bf16.msra.mxu0 0
        %930 = vmatprep.subr.bf16.mxu0 0
        %931 = vmatpush2.bf16.msra.mxu0 0
        %932 = vmatprep.subr.bf16.mxu0 0
        %933 = vmatpush2.bf16.msra.mxu0 0
        %934 = vmatprep.subr.bf16.mxu0 0
        %935 = vmatpush2.bf16.msra.mxu0 0
        %936 = vmatprep.mubr.bf16.mxu0 0
        %937 = vmatmul.mubr.bf16.gmra.mxu0 %v848
        %v938 = vpop.f32.mrf.mxu0
        %v939 = vadd.f32 %v854, %v938
        %v940 = vpop.f32.mrf.mxu0
        %v941 = vpop.f32.mrf.mxu0
        %v942 = vpop.f32.mrf.mxu0
        %943 = vdwg.mxu0
        %vm944 = vcmp.gt.f32.partialorder %v939, 20.0
        %v945 = vmin.f32 %v939, 20.0
        %v946 = vmul.f32 %v945, 1.442695
        %v947 = vpow.pop %v946
        %v948 = vadd.f32 %v947, 1.0
        %v949 = vlog2.pop %v948
        %v950 = vmul.f32 %v949, 0.6931472
        %v951 = vsel %vm944, %v939, %v950
        %v952 = vxor.u32 %v951, 2147483648
        %v953 = vmul.f32 %v952, 1.442695
        %v954 = vpow.pop %v953
        %v955 = vadd.f32 %v954, 1.0
        %v956 = vrcp.pop %v955
        %v957 = vmul.f32 1.0, %v956
        %v958 = vmul.f32 %v831, %v957
        %v959 = vxor.u32 %v779, 2147483648
        %v960 = vmul.f32 %v959, 1.442695
        %v961 = vpow.pop %v960
        %v962 = vadd.f32 %v961, 1.0
        %v963 = vrcp.pop %v962
        %v964 = vmul.f32 1.0, %v963
        %v965 = vmul.f32 %v958, %v964
        %v966 = vld [vmem:[%s518] sm:$0xf]
        %v967 = vld [vmem:[%s518 + $0x4] sm:$0xf]
        %v968 = vld [vmem:[%s518 + $0x8] sm:$0xf]
        %v969 = vld [vmem:[%s518 + $0xc] sm:$0xf]
        %v970 = vld [vmem:[%s518 + $0x10] sm:$0xf]
        %v971 = vld [vmem:[%s518 + $0x14] sm:$0xf]
        %v972 = vld [vmem:[%s518 + $0x18] sm:$0xf]
        %v973 = vld [vmem:[%s518 + $0x1c] sm:$0xf]
        %v974 = vld [vmem:[%s518 + $0x20] sm:$0xf]
        %v975 = vld [vmem:[%s518 + $0x24] sm:$0xf]
        %v976 = vld [vmem:[%s518 + $0x28] sm:$0xf]
        %v977 = vld [vmem:[%s518 + $0x2c] sm:$0xf]
        %v978 = vld [vmem:[%s518 + $0x30] sm:$0xf]
        %v979 = vld [vmem:[%s518 + $0x34] sm:$0xf]
        %v980 = vld [vmem:[%s518 + $0x38] sm:$0xf]
        %v981 = vld [vmem:[%s518 + $0x3c] sm:$0xf]
        %v982 = vpack.c.bf16 %v965, %v965
        %v999 = vunpack.c.l.b16 %v966
        %v1000 = vunpack.c.l.b16 %v967
        %v1001 = vunpack.c.l.b16 %v968
        %v1002 = vunpack.c.l.b16 %v969
        %v1003 = vunpack.c.l.b16 %v970
        %v1004 = vunpack.c.l.b16 %v971
        %v1005 = vunpack.c.l.b16 %v972
        %v1006 = vunpack.c.l.b16 %v973
        %v1007 = vunpack.c.l.b16 %v974
        %v1008 = vunpack.c.l.b16 %v975
        %v1009 = vunpack.c.l.b16 %v976
        %v1010 = vunpack.c.l.b16 %v977
        %v1011 = vunpack.c.l.b16 %v978
        %v1012 = vunpack.c.l.b16 %v979
        %v1013 = vunpack.c.l.b16 %v980
        %v1014 = vunpack.c.l.b16 %v981
        %v1015 = vpack.c.b16 %v1000, %v999
        %v1016 = vpack.c.b16 %v1002, %v1001
        %v1017 = vpack.c.b16 %v1004, %v1003
        %v1018 = vpack.c.b16 %v1006, %v1005
        %v1019 = vpack.c.b16 %v1008, %v1007
        %v1020 = vpack.c.b16 %v1010, %v1009
        %v1021 = vpack.c.b16 %v1012, %v1011
        %v1022 = vpack.c.b16 %v1014, %v1013
        %1031 = vmatprep.subr.bf16.mxu0 0
        %1032 = vmatpush1.bf16.msra.mxu0 %v1022
        %1033 = vmatprep.subr.bf16.mxu0 0
        %1034 = vmatpush1.bf16.msra.mxu0 %v1021
        %1035 = vmatprep.subr.bf16.mxu0 0
        %1036 = vmatpush1.bf16.msra.mxu0 %v1020
        %1037 = vmatprep.subr.bf16.mxu0 0
        %1038 = vmatpush1.bf16.msra.mxu0 %v1019
        %1039 = vmatprep.subr.bf16.mxu0 0
        %1040 = vmatpush1.bf16.msra.mxu0 %v1018
        %1041 = vmatprep.subr.bf16.mxu0 0
        %1042 = vmatpush1.bf16.msra.mxu0 %v1017
        %1043 = vmatprep.subr.bf16.mxu0 0
        %1044 = vmatpush1.bf16.msra.mxu0 %v1016
        %1045 = vmatprep.subr.bf16.mxu0 0
        %1046 = vmatpush1.bf16.msra.mxu0 %v1015
        %1047 = vmatprep.subr.bf16.mxu0 0
        %1048 = vmatpush2.bf16.msra.mxu0 0
        %1049 = vmatprep.subr.bf16.mxu0 0
        %1050 = vmatpush2.bf16.msra.mxu0 0
        %1051 = vmatprep.subr.bf16.mxu0 0
        %1052 = vmatpush2.bf16.msra.mxu0 0
        %1053 = vmatprep.subr.bf16.mxu0 0
        %1054 = vmatpush2.bf16.msra.mxu0 0
        %1055 = vmatprep.subr.bf16.mxu0 0
        %1056 = vmatpush2.bf16.msra.mxu0 0
        %1057 = vmatprep.subr.bf16.mxu0 0
        %1058 = vmatpush2.bf16.msra.mxu0 0
        %1059 = vmatprep.subr.bf16.mxu0 0
        %1060 = vmatpush2.bf16.msra.mxu0 0
        %1061 = vmatprep.subr.bf16.mxu0 0
        %1062 = vmatpush2.bf16.msra.mxu0 0
        %1063 = vmatprep.mubr.bf16.mxu0 0
        %1064 = vmatmul.mubr.bf16.gmra.mxu0 %v982
        %v1065 = vpop.f32.mrf.mxu0
        %v1066 = vadd.f32 0.0, %v1065
        %v1067 = vpop.f32.mrf.mxu0
        %v1068 = vpop.f32.mrf.mxu0
        %v1069 = vpop.f32.mrf.mxu0
        %1070 = vdwg.mxu0
        %v1071 = vld [vmem:[%s603] sm:$0x1]
        %v1073 = vlaneseq
        %v1074 = vshrl.u32 %v1073, 7
        %v1075 = vsub.s32 0, %v1074
        %v1076 = vrot.slane %v1071, %v1075
        %v1078 = vmul.f32 %v1066, %v1076
        %v1079 = vadd.f32 %v1078, %v616
        %p1080 = scmp.lt.s32.totalorder %s39, 1
        // Predicated region
        $region85: #{tpu_custom_call.1} parent=63 // pred_check
          %p1081 = pneg %p1080
        $region86: #{tpu_custom_call.1} parent=63 // pred_check_branch
          %1083 = sbr.rel (%p1081) target = $region88
        $region87: #{tpu_custom_call.1} parent=63 // pred_region
          %1084 = vst [vmem:[%s587] sm:$0xff] %v1079
        $region88: #{tpu_custom_call.1} parent=63 // pred_fallthru
          _
        %p1085 = scmp.eq.s32.totalorder %s39, 1
        // Predicated region
        $region89: #{tpu_custom_call.1} parent=63 // pred_check
          %p1086 = pneg %p1085
        $region90: #{tpu_custom_call.1} parent=63 // pred_check_branch
          %1088 = sbr.rel (%p1086) target = $region92
        $region91: #{tpu_custom_call.1} parent=63 // pred_region
          %v1089 = vld [vmem:[%s9] sm:$0x1]
          %v1090 = vld [vmem:[%s10] sm:$0x1]
          %1091 = vadd.xlane.f32.xlu0 %v1079
          %v1092 = vpop.xlane.xlu0 %1091
          %v1093 = vmul.f32 %v1092, 0.03125
          %v1094 = vsub.f32 %v1079, %v1093
          %v1095 = vmul.f32 %v1094, %v609
          %v1096 = vmul.f32 %v1095, %v1095
          %1097 = vadd.xlane.f32.xlu0 %v1096
          %v1098 = vpop.xlane.xlu0 %1097
          %v1099 = vmul.f32 %v1098, 0.03125
          %v1100 = vadd.f32 %v1099, 1e-05
          %v1101 = vrsqrt.pop %v1100
          %v1102 = vmul.f32 %v1095, %v1101
          %v1104 = vlaneseq
          %v1105 = vshrl.u32 %v1104, 7
          %v1106 = vsub.s32 0, %v1105
          %v1107 = vrot.slane %v1089, %v1106
          %v1109 = vmul.f32 %v1102, %v1107
          %v1111 = vlaneseq
          %v1112 = vshrl.u32 %v1111, 7
          %v1113 = vsub.s32 0, %v1112
          %v1114 = vrot.slane %v1090, %v1113
          %v1116 = vadd.f32 %v1109, %v1114
          %1117 = vst [vmem:[%s587] sm:$0xff] %v1116
        $region92: #{tpu_custom_call.1} parent=63 // pred_fallthru
          _
        %s1118 = sand.u32 %s330, 1
        %s1119 = scalar_lea.sflag [#allocation4], %s1118
        %s1120 = sand.u32 %s330, 1
        %s1121 = smul.addr %s1120, 8
        %s1122 = scalar_lea.vmem [#allocation10], %s1121
        // Predicated region
        $region93: #{tpu_custom_call.1} parent=63 // pred_check
          %p1123 = pneg %p340
        $region94: #{tpu_custom_call.1} parent=63 // pred_check_branch
          %1125 = sbr.rel (%p1123) target = $region96
        $region95: #{tpu_custom_call.1} parent=63 // pred_region
          %s1127 = ssub.s32 128, 128
          %1128 = vsyncadd %s1119, %s1127
          %s1129 = smul.addr %s38, 128
          %s1130 = scalar_lea.hbm %s11, %s1129
          %s1132 = sshll.u32 %s1122, 4
          %s1133 = int_to_ptr.vmem [resolvable:$true] %s1132
          %1135 = dma.vmem_to_hbm [thread:$0]  %s1133, 128, %s1130, %s1119
        $region96: #{tpu_custom_call.1} parent=63 // pred_fallthru
          _
      $region64: #{tpu_custom_call.1} parent=5 // pred_fallthru
        _
      %p1136 = scmp.le.s32.totalorder 2, %s29
      // Predicated region
      $region97: #{tpu_custom_call.1} parent=5 // pred_check
        %p1137 = pneg %p1136
      $region98: #{tpu_custom_call.1} parent=5 // pred_check_branch
        %1139 = sbr.rel (%p1137) target = $region100
      $region99: #{tpu_custom_call.1} parent=5 // pred_region
        %s1140 = ssub.s32 %s29, 2
        // Predicated region
        $region101: #{tpu_custom_call.1} parent=99 // pred_check
          %p1141 = pneg %p346
        $region102: #{tpu_custom_call.1} parent=99 // pred_check_branch
          %1143 = sbr.rel (%p1141) target = $region104
        $region103: #{tpu_custom_call.1} parent=99 // pred_region
          %s1144 = sand.u32 %s331, 1
          %s1145 = scalar_lea.sflag [#allocation4], %s1144
          %s1146 = sand.u32 %s331, 1
          %s1147 = smul.addr %s1146, 8
          %s1148 = scalar_lea.vmem [#allocation10], %s1147
          %1149 = dma.done %s1145, 128
        $region104: #{tpu_custom_call.1} parent=99 // pred_fallthru
          _
      $region100: #{tpu_custom_call.1} parent=5 // pred_fallthru
        _
    $region6: #{tpu_custom_call.1} parent=1 // loop_footer
      %s33 = sadd.s32 1, %s29
    $region7: #{tpu_custom_call.1} parent=1 // loop_footer_branch
      %28 = sbr.rel target = $region3
    $region8: #{tpu_custom_call.1} parent=1 // loop_exit
      _
    %1150 = vsyncpa [#allocation3], 1
    %s1151 = scalar_lea.sflag [#allocation3], 1
    %1152 = vsyncpa %s1151, 1
    %1153 = vsyncpa [#allocation6], 1
    %s1154 = scalar_lea.sflag [#allocation6], 1
    %1155 = vsyncpa %s1154, 1
    %1156 = vsyncpa [#allocation9], 1
    %s1157 = scalar_lea.sflag [#allocation9], 1
    %1158 = vsyncpa %s1157, 1
    %1159 = vsyncpa [#allocation4], 1
    %s1160 = scalar_lea.sflag [#allocation4], 1
    %1161 = vsyncpa %s1160, 1

</llo_original>
